<compile_context>
chip_gen: v5e
topology: v5e:2x2
jax: 0.10.0
libtpu: 0.0.40
codegen_flags: <defaults>
</compile_context>

<pallas_src>
import functools

import jax
import jax.numpy as jnp
from jax.experimental import pallas as pl
from jax.experimental.pallas import tpu as pltpu

# ------------------------- model hyper-parameters ---------------------------
N_ATOM_TYPE = 16
N_BOND_TYPE = 8
D_NODE = 32          # must equal D_HID for the 'res' update path
D_EDGE = 32
D_ATOM_FEAT = 4
D_HID = 32
D_READOUT = 32       # head/tail proj consume the readout -> equals D_HID
N_PROP_STEP = 2
N_SIDE_EFFECT = 6
N_LBLS = 12

_LN_EPS = 1e-5
_LEAKY_SLOPE = 0.01  # nn.LeakyReLU default
_NEG_BIG = -1e30


def _leaky(x):
    return jnp.where(x >= 0.0, x, _LEAKY_SLOPE * x)


def _onehot_rows(idx_col, n_cols, dtype):
    # idx_col: (L, 1) int32 -> (L, n_cols) one-hot: r[p, j] = (idx_col[p] == j)
    cols = jax.lax.broadcasted_iota(jnp.int32, (idx_col.shape[0], n_cols), 1)
    return jnp.where(idx_col == cols, 1.0, 0.0).astype(dtype)


def _onehot_cols(idx_row, n_rows, dtype):
    # idx_row: (1, L) int32 -> (n_rows, L) scatter matrix: r[i, p] = (i == idx_row[p])
    rows = jax.lax.broadcasted_iota(jnp.int32, (n_rows, idx_row.shape[1]), 0)
    return jnp.where(rows == idx_row, 1.0, 0.0).astype(dtype)


# ------------------------------ fused kernel --------------------------------
def _make_fused_kernel(*, n_tot, n_graphs, n_steps, inv_temp):
    f32 = jnp.float32
    bf16 = jnp.bfloat16
    D = D_HID

    def kernel(atom_type_ref, atom_feat_ref, bond_type_ref,
               mp_idx_ref, mp_seg_ref, pair_cnt_ref, rd_seg_ref,
               se_idx_ref, se_seg_ref,
               atom_emb_ref, bond_emb_ref, se_emb_ref,
               proj_we_ref, proj_wf_ref, proj_b_ref,
               nkv_w_ref,
               edge_w1_ref, edge_b1_ref, edge_w2_ref, edge_b2_ref,
               msg_w1_ref, msg_b1_ref, msg_w2_ref, msg_b2_ref,
               ln_g_ref, ln_b_ref,
               rd_w_ref, rd_b_ref, ht_w_ref,
               out_ref):
        # ---- atom / bond composition (embedding lookup as one-hot matmul) --
        atom_oh = _onehot_rows(atom_type_ref[...], N_ATOM_TYPE, f32)
        emb = jnp.dot(atom_oh, atom_emb_ref[...], preferred_element_type=f32)
        nodes = (jnp.dot(emb, proj_we_ref[...], preferred_element_type=f32)
                 + jnp.dot(atom_feat_ref[...], proj_wf_ref[...],
                           preferred_element_type=f32)
                 + proj_b_ref[...])
        bond_oh = _onehot_rows(bond_type_ref[...], N_BOND_TYPE, f32)
        bonds = jnp.dot(bond_oh, bond_emb_ref[...], preferred_element_type=f32)

        # ---- step-invariant selection matrices, built once in registers ----
        mp_gather = _onehot_rows(mp_idx_ref[...], n_tot, bf16)    # (E, n)
        mp_scatter = _onehot_cols(mp_seg_ref[...], n_tot, bf16)   # (n, E)
        pair_cnt = pair_cnt_ref[...]                               # (n, n) f32
        has_pair = pair_cnt > 0.0

        # ---- propagation steps (unrolled, everything stays resident) -------
        for s in range(n_steps):
            # packed node|key|val projection -> one lane-dense matmul
            hkv = jnp.dot(nodes, nkv_w_ref[s], preferred_element_type=f32)
            hj, kp, vp = hkv[:, 0:D], hkv[:, D:2 * D], hkv[:, 2 * D:3 * D]

            # intra-molecular message passing (gather/scatter as bf16 matmuls)
            e = _leaky(jnp.dot(bonds, edge_w1_ref[s],
                               preferred_element_type=f32) + edge_b1_ref[s])
            e = _leaky(jnp.dot(e, edge_w2_ref[s],
                               preferred_element_type=f32) + edge_b2_ref[s])
            msg = jnp.dot(mp_gather, hj.astype(bf16),
                          preferred_element_type=f32) + e
            msg = _leaky(jnp.dot(msg, msg_w1_ref[s],
                                 preferred_element_type=f32) + msg_b1_ref[s])
            msg = jnp.dot(msg, msg_w2_ref[s],
                          preferred_element_type=f32) + msg_b2_ref[s]
            inner = jnp.dot(mp_scatter, msg.astype(bf16),
                            preferred_element_type=f32)

            # cross-molecular co-attention: masked dense attention with a
            # row-wise (per-segment) max -> no global-max underflow hazard.
            s_mat = jax.lax.dot_general(
                kp, kp, (((1,), (1,)), ((), ())),
                preferred_element_type=f32) * inv_temp              # (n, n)
            s_mat = jnp.where(has_pair, s_mat, _NEG_BIG)
            m = jnp.max(s_mat, axis=-1, keepdims=True)               # (n, 1)
            pexp = pair_cnt * jnp.exp(s_mat - m)                      # (n, n)
            z = jnp.sum(pexp, axis=-1, keepdims=True)                 # (n, 1)
            num = jnp.dot(pexp, vp, preferred_element_type=f32)       # (n, D)
            inv_z = pl.reciprocal(jnp.where(z > 0.0, z, 1.0), approx=True)
            outer = jnp.where(z > 0.0, num * inv_z, 0.0)

            # residual update + LayerNorm (update_method='res')
            x = nodes + inner + outer
            mu = jnp.mean(x, axis=-1, keepdims=True)
            var = jnp.mean((x - mu) ** 2, axis=-1, keepdims=True)
            nodes = ((x - mu) * jax.lax.rsqrt(var + _LN_EPS)) * ln_g_ref[s] \
                    + ln_b_ref[s]

        # ---- readout: per (drug, graph) sum of leaky(pre_readout(node)) ----
        h = _leaky(jnp.dot(nodes, rd_w_ref[...], preferred_element_type=f32)
                   + rd_b_ref[...])
        rd_scatter = _onehot_cols(rd_seg_ref[...], 2 * n_graphs, bf16)
        dvec = jnp.dot(rd_scatter, h.astype(bf16),
                       preferred_element_type=f32)                   # (2B, D)

        # ---- side-effect translation scoring (score_fn='trans') ------------
        se_seg = se_seg_ref[...]
        d1 = jnp.dot(_onehot_rows(se_seg, 2 * n_graphs, f32), dvec,
                     preferred_element_type=f32)
        d2 = jnp.dot(_onehot_rows(se_seg + n_graphs, 2 * n_graphs, f32), dvec,
                     preferred_element_type=f32)
        r = jnp.dot(_onehot_rows(se_idx_ref[...], N_SIDE_EFFECT, f32),
                    se_emb_ref[...], preferred_element_type=f32)
        # packed head|tail projections
        ht1 = jnp.dot(d1, ht_w_ref[...], preferred_element_type=f32)
        ht2 = jnp.dot(d2, ht_w_ref[...], preferred_element_type=f32)
        h1, t1 = ht1[:, 0:D], ht1[:, D:2 * D]
        h2, t2 = ht2[:, 0:D], ht2[:, D:2 * D]
        dfwd = h1 + r - t2
        dbwd = h2 + r - t1
        out_ref[...] = (jnp.sqrt(jnp.sum(dfwd * dfwd, axis=-1, keepdims=True))
                        + jnp.sqrt(jnp.sum(dbwd * dbwd, axis=-1, keepdims=True)))

    return kernel


def _full_spec(shape):
    nd = len(shape)
    return pl.BlockSpec(shape, lambda i, _nd=nd: (0,) * _nd)


# ------------------------------ forward (jit) --------------------------------
@functools.partial(jax.jit, static_argnames=('n_graphs',))
def ddi_forward(p,
                seg_m1, atom_type1, atom_feat1, bond_type1,
                inn_seg_i1, inn_idx_j1, out_seg_i1, out_idx_j1,
                seg_m2, atom_type2, atom_feat2, bond_type2,
                inn_seg_i2, inn_idx_j2, out_seg_i2, out_idx_j2,
                se_idx, drug_se_seg, n_graphs):
    # dropout == identity (eval mode)
    i32 = jnp.int32
    n1, n2 = atom_type1.shape[0], atom_type2.shape[0]
    n_tot = n1 + n2
    m = se_idx.shape[0]

    atom_type = jnp.concatenate([atom_type1, atom_type2]).astype(i32).reshape(n_tot, 1)
    atom_feat = jnp.concatenate([atom_feat1, atom_feat2], axis=0).astype(jnp.float32)
    bond_type = jnp.concatenate([bond_type1, bond_type2]).astype(i32).reshape(-1, 1)

    # combined index sets (drug-2 atom indices offset by n1)
    mp_idx = jnp.concatenate([inn_idx_j1, inn_idx_j2 + n1]).astype(i32).reshape(-1, 1)
    mp_seg = jnp.concatenate([inn_seg_i1, inn_seg_i2 + n1]).astype(i32).reshape(1, -1)

    # dense cross-molecular pair-count mask (step-invariant, built once)
    co_seg = jnp.concatenate([out_seg_i1, out_seg_i2 + n1]).astype(i32)
    co_idx = jnp.concatenate([out_idx_j1 + n1, out_idx_j2]).astype(i32)
    pair_cnt = jnp.zeros((n_tot, n_tot), jnp.float32).at[co_seg, co_idx].add(1.0)

    rd_seg = jnp.concatenate([seg_m1, seg_m2 + n_graphs]).astype(i32).reshape(1, n_tot)
    se_idx2 = se_idx.astype(i32).reshape(m, 1)
    se_seg2 = drug_se_seg.astype(i32).reshape(m, 1)

    inv_temp = 1.0 / (float(D_HID) ** 0.5)
    kernel = _make_fused_kernel(n_tot=n_tot, n_graphs=n_graphs,
                                n_steps=N_PROP_STEP, inv_temp=inv_temp)

    args = (atom_type, atom_feat, bond_type, mp_idx, mp_seg, pair_cnt, rd_seg,
            se_idx2, se_seg2,
            p['atom_emb'], p['bond_emb'], p['side_effect_emb'],
            p['atom_proj_w_emb'], p['atom_proj_w_feat'], p['atom_proj_b'],
            p['nkv_w'],
            p['edge_w1'], p['edge_b1'], p['edge_w2'], p['edge_b2'],
            p['msg_w1'], p['msg_b1'], p['msg_w2'], p['msg_b2'],
            p['ln_g'], p['ln_b'],
            p['pre_readout_w'], p['pre_readout_b'], p['ht_w'])

    score = pl.pallas_call(
        kernel,
        grid=(1,),
        out_shape=jax.ShapeDtypeStruct((m, 1), jnp.float32),
        in_specs=[_full_spec(a.shape) for a in args],
        out_specs=_full_spec((m, 1)),
        compiler_params=pltpu.CompilerParams(
            dimension_semantics=("arbitrary",)),
    )(*args)
    return (score[:, 0],)


# ------------------------------ parameter init -------------------------------
def _xavier(key, shape):
    fan_in, fan_out = shape[0], shape[-1]
    std = (2.0 / (fan_in + fan_out)) ** 0.5
    return (std * jax.random.normal(key, shape)).astype(jnp.float32)


def init_params(key):
    ks = iter(jax.random.split(key, 64))

    # nn.Linear weights stored pre-transposed (D_in, D_out); biases (1, D_out).
    atom_emb = _xavier(next(ks), (N_ATOM_TYPE, D_NODE)).at[0].set(0.0)   # padding_idx=0
    bond_emb = _xavier(next(ks), (N_BOND_TYPE, D_EDGE)).at[0].set(0.0)   # padding_idx=0
    atom_proj_w = _xavier(next(ks), (D_NODE + D_ATOM_FEAT, D_NODE))
    head_w = _xavier(next(ks), (D_HID, D_HID))
    tail_w = _xavier(next(ks), (D_HID, D_HID))

    p = {
        'atom_emb': atom_emb,
        'bond_emb': bond_emb,
        'side_effect_emb': _xavier(next(ks), (N_SIDE_EFFECT, D_HID)),
        'atom_proj_w_emb': atom_proj_w[:D_NODE],
        'atom_proj_w_feat': atom_proj_w[D_NODE:],
        'atom_proj_b': jnp.zeros((1, D_NODE), jnp.float32),
        'ht_w': jnp.concatenate([head_w, tail_w], axis=1),   # packed (D, 2D)
        'pre_readout_w': _xavier(next(ks), (D_HID, D_READOUT)),
        'pre_readout_b': jnp.zeros((1, D_READOUT), jnp.float32),
        'lbl_predict_w': _xavier(next(ks), (D_READOUT, N_LBLS)),  # unused (SE path)
        'lbl_predict_b': jnp.zeros((1, N_LBLS), jnp.float32),
    }

    def stack(make):
        return jnp.stack([make() for _ in range(N_PROP_STEP)])

    node_w = stack(lambda: _xavier(next(ks), (D_HID, D_HID)))
    key_w = stack(lambda: _xavier(next(ks), (D_HID, D_HID)))
    val_w = stack(lambda: _xavier(next(ks), (D_HID, D_HID)))
    p['nkv_w'] = jnp.concatenate([node_w, key_w, val_w], axis=-1)  # (S, D, 3D) packed
    p['edge_w1'] = stack(lambda: _xavier(next(ks), (D_EDGE, D_HID)))
    p['edge_b1'] = jnp.zeros((N_PROP_STEP, 1, D_HID), jnp.float32)
    p['edge_w2'] = stack(lambda: _xavier(next(ks), (D_HID, D_HID)))
    p['edge_b2'] = jnp.zeros((N_PROP_STEP, 1, D_HID), jnp.float32)
    p['msg_w1'] = stack(lambda: _xavier(next(ks), (D_HID, D_HID)))
    p['msg_b1'] = jnp.zeros((N_PROP_STEP, 1, D_HID), jnp.float32)
    p['msg_w2'] = stack(lambda: _xavier(next(ks), (D_HID, D_HID)))
    p['msg_b2'] = jnp.zeros((N_PROP_STEP, 1, D_HID), jnp.float32)
    p['ln_g'] = jnp.ones((N_PROP_STEP, 1, D_HID), jnp.float32)
    p['ln_b'] = jnp.zeros((N_PROP_STEP, 1, D_HID), jnp.float32)
    return p


# ----------------------------------- main ------------------------------------
if __name__ == "__main__":
    key = jax.random.PRNGKey(0)
    kp, kd = jax.random.split(key)
    params = init_params(kp)

    B, APM, EPM = 2, 8, 12          # 2 drug pairs, 8 atoms / 12 bonds per mol
    N = B * APM                     # atoms per drug side
    E = B * EPM                     # intra-molecular edges per drug side
    ks = iter(jax.random.split(kd, 32))

    def make_graph():
        seg_m = jnp.repeat(jnp.arange(B, dtype=jnp.int32), APM)
        atom_type = jax.random.randint(next(ks), (N,), 1, N_ATOM_TYPE, dtype=jnp.int32)
        atom_feat = jax.random.normal(next(ks), (N, D_ATOM_FEAT), jnp.float32)
        bond_type = jax.random.randint(next(ks), (E,), 1, N_BOND_TYPE, dtype=jnp.int32)
        base = jnp.repeat(jnp.arange(B, dtype=jnp.int32) * APM, EPM)
        inn_seg_i = base + jax.random.randint(next(ks), (E,), 0, APM, dtype=jnp.int32)
        inn_idx_j = base + jax.random.randint(next(ks), (E,), 0, APM, dtype=jnp.int32)
        return seg_m, atom_type, atom_feat, bond_type, inn_seg_i, inn_idx_j

    (seg_m1, atom_type1, atom_feat1, bond_type1, inn_seg_i1, inn_idx_j1) = make_graph()
    (seg_m2, atom_type2, atom_feat2, bond_type2, inn_seg_i2, inn_idx_j2) = make_graph()

    # all cross-graph atom pairs belonging to the same drug pair
    ii, jj = jnp.meshgrid(jnp.arange(N, dtype=jnp.int32),
                          jnp.arange(N, dtype=jnp.int32), indexing='ij')
    mask = seg_m1[ii] == seg_m2[jj]
    out_seg_i1 = ii[mask]
    out_idx_j1 = jj[mask]
    out_seg_i2 = out_idx_j1
    out_idx_j2 = out_seg_i1

    M = 4                           # (drug-pair, side-effect) samples
    drug_se_seg = jnp.array([0, 0, 1, 1], dtype=jnp.int32)
    se_idx = jax.random.randint(next(ks), (M,), 0, N_SIDE_EFFECT, dtype=jnp.int32)

    (score,) = ddi_forward(params,
                           seg_m1, atom_type1, atom_feat1, bond_type1,
                           inn_seg_i1, inn_idx_j1, out_seg_i1, out_idx_j1,
                           seg_m2, atom_type2, atom_feat2, bond_type2,
                           inn_seg_i2, inn_idx_j2, out_seg_i2, out_idx_j2,
                           se_idx, drug_se_seg, n_graphs=B)
    score = jax.block_until_ready(score)
    assert score.shape == (M,) and score.dtype == jnp.float32
    assert bool(jnp.all(jnp.isfinite(score)))
    print("KERNEL_OK")
</pallas_src>

<mosaic_0001>
module attributes {stable_mosaic.version = 11 : i64} {
  func.func @kernel(%arg0: i32, %arg1: memref<32x1xi32, #tpu.memory_space<vmem>>, %arg2: memref<32x4xf32, #tpu.memory_space<vmem>>, %arg3: memref<48x1xi32, #tpu.memory_space<vmem>>, %arg4: memref<48x1xi32, #tpu.memory_space<vmem>>, %arg5: memref<1x48xi32, #tpu.memory_space<vmem>>, %arg6: memref<32x32xf32, #tpu.memory_space<vmem>>, %arg7: memref<1x32xi32, #tpu.memory_space<vmem>>, %arg8: memref<4x1xi32, #tpu.memory_space<vmem>>, %arg9: memref<4x1xi32, #tpu.memory_space<vmem>>, %arg10: memref<16x32xf32, #tpu.memory_space<vmem>>, %arg11: memref<8x32xf32, #tpu.memory_space<vmem>>, %arg12: memref<6x32xf32, #tpu.memory_space<vmem>>, %arg13: memref<32x32xf32, #tpu.memory_space<vmem>>, %arg14: memref<4x32xf32, #tpu.memory_space<vmem>>, %arg15: memref<1x32xf32, #tpu.memory_space<vmem>>, %arg16: memref<2x32x96xf32, #tpu.memory_space<vmem>>, %arg17: memref<2x32x32xf32, #tpu.memory_space<vmem>>, %arg18: memref<2x1x32xf32, #tpu.memory_space<vmem>>, %arg19: memref<2x32x32xf32, #tpu.memory_space<vmem>>, %arg20: memref<2x1x32xf32, #tpu.memory_space<vmem>>, %arg21: memref<2x32x32xf32, #tpu.memory_space<vmem>>, %arg22: memref<2x1x32xf32, #tpu.memory_space<vmem>>, %arg23: memref<2x32x32xf32, #tpu.memory_space<vmem>>, %arg24: memref<2x1x32xf32, #tpu.memory_space<vmem>>, %arg25: memref<2x1x32xf32, #tpu.memory_space<vmem>>, %arg26: memref<2x1x32xf32, #tpu.memory_space<vmem>>, %arg27: memref<32x32xf32, #tpu.memory_space<vmem>>, %arg28: memref<1x32xf32, #tpu.memory_space<vmem>>, %arg29: memref<32x64xf32, #tpu.memory_space<vmem>>, %arg30: memref<4x1xf32, #tpu.memory_space<vmem>>) attributes {dimension_semantics = [#tpu.dimension_semantics<arbitrary>], iteration_bounds = array<i64: 1>, scalar_prefetch = 0 : i64, scratch_operands = 0 : i64, tpu.core_type = #tpu.core_type<tc>, window_params = [{pipeline_mode = #tpu.pipeline_mode<synchronous>, transform_indices = @transform_0, window_bounds = array<i64: 32, 1>}, {pipeline_mode = #tpu.pipeline_mode<synchronous>, transform_indices = @transform_1, window_bounds = array<i64: 32, 4>}, {pipeline_mode = #tpu.pipeline_mode<synchronous>, transform_indices = @transform_2, window_bounds = array<i64: 48, 1>}, {pipeline_mode = #tpu.pipeline_mode<synchronous>, transform_indices = @transform_3, window_bounds = array<i64: 48, 1>}, {pipeline_mode = #tpu.pipeline_mode<synchronous>, transform_indices = @transform_4, window_bounds = array<i64: 1, 48>}, {pipeline_mode = #tpu.pipeline_mode<synchronous>, transform_indices = @transform_5, window_bounds = array<i64: 32, 32>}, {pipeline_mode = #tpu.pipeline_mode<synchronous>, transform_indices = @transform_6, window_bounds = array<i64: 1, 32>}, {pipeline_mode = #tpu.pipeline_mode<synchronous>, transform_indices = @transform_7, window_bounds = array<i64: 4, 1>}, {pipeline_mode = #tpu.pipeline_mode<synchronous>, transform_indices = @transform_8, window_bounds = array<i64: 4, 1>}, {pipeline_mode = #tpu.pipeline_mode<synchronous>, transform_indices = @transform_9, window_bounds = array<i64: 16, 32>}, {pipeline_mode = #tpu.pipeline_mode<synchronous>, transform_indices = @transform_10, window_bounds = array<i64: 8, 32>}, {pipeline_mode = #tpu.pipeline_mode<synchronous>, transform_indices = @transform_11, window_bounds = array<i64: 6, 32>}, {pipeline_mode = #tpu.pipeline_mode<synchronous>, transform_indices = @transform_12, window_bounds = array<i64: 32, 32>}, {pipeline_mode = #tpu.pipeline_mode<synchronous>, transform_indices = @transform_13, window_bounds = array<i64: 4, 32>}, {pipeline_mode = #tpu.pipeline_mode<synchronous>, transform_indices = @transform_14, window_bounds = array<i64: 1, 32>}, {pipeline_mode = #tpu.pipeline_mode<synchronous>, transform_indices = @transform_15, window_bounds = array<i64: 2, 32, 96>}, {pipeline_mode = #tpu.pipeline_mode<synchronous>, transform_indices = @transform_16, window_bounds = array<i64: 2, 32, 32>}, {pipeline_mode = #tpu.pipeline_mode<synchronous>, transform_indices = @transform_17, window_bounds = array<i64: 2, 1, 32>}, {pipeline_mode = #tpu.pipeline_mode<synchronous>, transform_indices = @transform_18, window_bounds = array<i64: 2, 32, 32>}, {pipeline_mode = #tpu.pipeline_mode<synchronous>, transform_indices = @transform_19, window_bounds = array<i64: 2, 1, 32>}, {pipeline_mode = #tpu.pipeline_mode<synchronous>, transform_indices = @transform_20, window_bounds = array<i64: 2, 32, 32>}, {pipeline_mode = #tpu.pipeline_mode<synchronous>, transform_indices = @transform_21, window_bounds = array<i64: 2, 1, 32>}, {pipeline_mode = #tpu.pipeline_mode<synchronous>, transform_indices = @transform_22, window_bounds = array<i64: 2, 32, 32>}, {pipeline_mode = #tpu.pipeline_mode<synchronous>, transform_indices = @transform_23, window_bounds = array<i64: 2, 1, 32>}, {pipeline_mode = #tpu.pipeline_mode<synchronous>, transform_indices = @transform_24, window_bounds = array<i64: 2, 1, 32>}, {pipeline_mode = #tpu.pipeline_mode<synchronous>, transform_indices = @transform_25, window_bounds = array<i64: 2, 1, 32>}, {pipeline_mode = #tpu.pipeline_mode<synchronous>, transform_indices = @transform_26, window_bounds = array<i64: 32, 32>}, {pipeline_mode = #tpu.pipeline_mode<synchronous>, transform_indices = @transform_27, window_bounds = array<i64: 1, 32>}, {pipeline_mode = #tpu.pipeline_mode<synchronous>, transform_indices = @transform_28, window_bounds = array<i64: 32, 64>}, {pipeline_mode = #tpu.pipeline_mode<synchronous>, transform_indices = @transform_29, window_bounds = array<i64: 4, 1>}]} {
    %c0 = arith.constant 0 : index
    %c0_0 = arith.constant 0 : index
    %0 = vector.load %arg1[%c0, %c0_0] : memref<32x1xi32, #tpu.memory_space<vmem>>, vector<32x1xi32>
    %1 = tpu.iota {dimensions = array<i32: 1>} : vector<32x16xi32>
    %2 = vector.broadcast %0 : vector<32x1xi32> to vector<32x16xi32>
    %3 = arith.cmpi eq, %2, %1 : vector<32x16xi32>
    %cst = arith.constant 1.000000e+00 : f32
    %cst_1 = arith.constant 0.000000e+00 : f32
    %4 = vector.broadcast %cst : f32 to vector<32x16xf32>
    %5 = vector.broadcast %cst_1 : f32 to vector<32x16xf32>
    %6 = arith.select %3, %4, %5 : vector<32x16xi1>, vector<32x16xf32>
    %c0_2 = arith.constant 0 : index
    %c0_3 = arith.constant 0 : index
    %7 = vector.load %arg10[%c0_2, %c0_3] : memref<16x32xf32, #tpu.memory_space<vmem>>, vector<16x32xf32>
    %cst_4 = arith.constant dense<0.000000e+00> : vector<32x32xf32>
    %8 = tpu.matmul %6, %7, %cst_4 {dimension_numbers = #tpu.dot_dimension_numbers<[1], [0], [0], [1], [0, 0, 1, 1], [], []>} : vector<32x16xf32>, vector<16x32xf32>, vector<32x32xf32> -> vector<32x32xf32>
    %c0_5 = arith.constant 0 : index
    %c0_6 = arith.constant 0 : index
    %9 = vector.load %arg13[%c0_5, %c0_6] : memref<32x32xf32, #tpu.memory_space<vmem>>, vector<32x32xf32>
    %cst_7 = arith.constant dense<0.000000e+00> : vector<32x32xf32>
    %10 = tpu.matmul %8, %9, %cst_7 {dimension_numbers = #tpu.dot_dimension_numbers<[1], [0], [0], [1], [0, 0, 1, 1], [], []>} : vector<32x32xf32>, vector<32x32xf32>, vector<32x32xf32> -> vector<32x32xf32>
    %c0_8 = arith.constant 0 : index
    %c0_9 = arith.constant 0 : index
    %11 = vector.load %arg2[%c0_8, %c0_9] : memref<32x4xf32, #tpu.memory_space<vmem>>, vector<32x4xf32>
    %c0_10 = arith.constant 0 : index
    %c0_11 = arith.constant 0 : index
    %12 = vector.load %arg14[%c0_10, %c0_11] : memref<4x32xf32, #tpu.memory_space<vmem>>, vector<4x32xf32>
    %cst_12 = arith.constant dense<0.000000e+00> : vector<32x32xf32>
    %13 = tpu.matmul %11, %12, %cst_12 {dimension_numbers = #tpu.dot_dimension_numbers<[1], [0], [0], [1], [0, 0, 1, 1], [], []>} : vector<32x4xf32>, vector<4x32xf32>, vector<32x32xf32> -> vector<32x32xf32>
    %14 = arith.addf %10, %13 : vector<32x32xf32>
    %c0_13 = arith.constant 0 : index
    %c0_14 = arith.constant 0 : index
    %15 = vector.load %arg15[%c0_13, %c0_14] : memref<1x32xf32, #tpu.memory_space<vmem>>, vector<1x32xf32>
    %16 = vector.broadcast %15 : vector<1x32xf32> to vector<32x32xf32>
    %17 = arith.addf %14, %16 : vector<32x32xf32>
    %c0_15 = arith.constant 0 : index
    %c0_16 = arith.constant 0 : index
    %18 = vector.load %arg3[%c0_15, %c0_16] : memref<48x1xi32, #tpu.memory_space<vmem>>, vector<48x1xi32>
    %19 = tpu.iota {dimensions = array<i32: 1>} : vector<48x8xi32>
    %20 = vector.broadcast %18 : vector<48x1xi32> to vector<48x8xi32>
    %21 = arith.cmpi eq, %20, %19 : vector<48x8xi32>
    %cst_17 = arith.constant 1.000000e+00 : f32
    %cst_18 = arith.constant 0.000000e+00 : f32
    %22 = vector.broadcast %cst_17 : f32 to vector<48x8xf32>
    %23 = vector.broadcast %cst_18 : f32 to vector<48x8xf32>
    %24 = arith.select %21, %22, %23 : vector<48x8xi1>, vector<48x8xf32>
    %c0_19 = arith.constant 0 : index
    %c0_20 = arith.constant 0 : index
    %25 = vector.load %arg11[%c0_19, %c0_20] : memref<8x32xf32, #tpu.memory_space<vmem>>, vector<8x32xf32>
    %cst_21 = arith.constant dense<0.000000e+00> : vector<48x32xf32>
    %26 = tpu.matmul %24, %25, %cst_21 {dimension_numbers = #tpu.dot_dimension_numbers<[1], [0], [0], [1], [0, 0, 1, 1], [], []>} : vector<48x8xf32>, vector<8x32xf32>, vector<48x32xf32> -> vector<48x32xf32>
    %c0_22 = arith.constant 0 : index
    %c0_23 = arith.constant 0 : index
    %27 = vector.load %arg4[%c0_22, %c0_23] : memref<48x1xi32, #tpu.memory_space<vmem>>, vector<48x1xi32>
    %28 = tpu.iota {dimensions = array<i32: 1>} : vector<48x32xi32>
    %29 = vector.broadcast %27 : vector<48x1xi32> to vector<48x32xi32>
    %30 = arith.cmpi eq, %29, %28 : vector<48x32xi32>
    %cst_24 = arith.constant 1.000000e+00 : f32
    %cst_25 = arith.constant 0.000000e+00 : f32
    %31 = vector.broadcast %cst_24 : f32 to vector<48x32xf32>
    %32 = vector.broadcast %cst_25 : f32 to vector<48x32xf32>
    %33 = arith.select %30, %31, %32 : vector<48x32xi1>, vector<48x32xf32>
    %34 = arith.truncf %33 : vector<48x32xf32> to vector<48x32xbf16>
    %c0_26 = arith.constant 0 : index
    %c0_27 = arith.constant 0 : index
    %35 = vector.load %arg5[%c0_26, %c0_27] : memref<1x48xi32, #tpu.memory_space<vmem>>, vector<1x48xi32>
    %36 = tpu.iota {dimensions = array<i32: 0>} : vector<32x48xi32>
    %37 = vector.broadcast %35 : vector<1x48xi32> to vector<32x48xi32>
    %38 = arith.cmpi eq, %36, %37 : vector<32x48xi32>
    %cst_28 = arith.constant 1.000000e+00 : f32
    %cst_29 = arith.constant 0.000000e+00 : f32
    %39 = vector.broadcast %cst_28 : f32 to vector<32x48xf32>
    %40 = vector.broadcast %cst_29 : f32 to vector<32x48xf32>
    %41 = arith.select %38, %39, %40 : vector<32x48xi1>, vector<32x48xf32>
    %42 = arith.truncf %41 : vector<32x48xf32> to vector<32x48xbf16>
    %c0_30 = arith.constant 0 : index
    %c0_31 = arith.constant 0 : index
    %43 = vector.load %arg6[%c0_30, %c0_31] : memref<32x32xf32, #tpu.memory_space<vmem>>, vector<32x32xf32>
    %cst_32 = arith.constant 0.000000e+00 : f32
    %44 = vector.broadcast %cst_32 : f32 to vector<32x32xf32>
    %45 = arith.cmpf ogt, %43, %44 : vector<32x32xf32>
    %c0_33 = arith.constant 0 : index
    %c0_34 = arith.constant 0 : index
    %c0_35 = arith.constant 0 : index
    %46 = vector.load %arg16[%c0_33, %c0_34, %c0_35] : memref<2x32x96xf32, #tpu.memory_space<vmem>>, vector<1x32x96xf32>
    %47 = vector.shape_cast %46 : vector<1x32x96xf32> to vector<32x96xf32>
    %cst_36 = arith.constant dense<0.000000e+00> : vector<32x96xf32>
    %48 = tpu.matmul %17, %47, %cst_36 {dimension_numbers = #tpu.dot_dimension_numbers<[1], [0], [0], [1], [0, 0, 1, 1], [], []>} : vector<32x32xf32>, vector<32x96xf32>, vector<32x96xf32> -> vector<32x96xf32>
    %49 = vector.extract_strided_slice %48 {offsets = [0, 0], sizes = [32, 32], strides = [1, 1]} : vector<32x96xf32> to vector<32x32xf32>
    %50 = vector.extract_strided_slice %48 {offsets = [0, 32], sizes = [32, 32], strides = [1, 1]} : vector<32x96xf32> to vector<32x32xf32>
    %51 = vector.extract_strided_slice %48 {offsets = [0, 64], sizes = [32, 32], strides = [1, 1]} : vector<32x96xf32> to vector<32x32xf32>
    %c0_37 = arith.constant 0 : index
    %c0_38 = arith.constant 0 : index
    %c0_39 = arith.constant 0 : index
    %52 = vector.load %arg17[%c0_37, %c0_38, %c0_39] : memref<2x32x32xf32, #tpu.memory_space<vmem>>, vector<1x32x32xf32>
    %53 = vector.shape_cast %52 : vector<1x32x32xf32> to vector<32x32xf32>
    %cst_40 = arith.constant dense<0.000000e+00> : vector<48x32xf32>
    %54 = tpu.matmul %26, %53, %cst_40 {dimension_numbers = #tpu.dot_dimension_numbers<[1], [0], [0], [1], [0, 0, 1, 1], [], []>} : vector<48x32xf32>, vector<32x32xf32>, vector<48x32xf32> -> vector<48x32xf32>
    %c0_41 = arith.constant 0 : index
    %c0_42 = arith.constant 0 : index
    %c0_43 = arith.constant 0 : index
    %55 = vector.load %arg18[%c0_41, %c0_42, %c0_43] : memref<2x1x32xf32, #tpu.memory_space<vmem>>, vector<1x1x32xf32>
    %56 = vector.shape_cast %55 : vector<1x1x32xf32> to vector<1x32xf32>
    %57 = vector.broadcast %56 : vector<1x32xf32> to vector<48x32xf32>
    %58 = arith.addf %54, %57 : vector<48x32xf32>
    %cst_44 = arith.constant 0.000000e+00 : f32
    %59 = vector.broadcast %cst_44 : f32 to vector<48x32xf32>
    %60 = arith.cmpf oge, %58, %59 : vector<48x32xf32>
    %cst_45 = arith.constant 0.00999999977 : f32
    %61 = vector.broadcast %cst_45 : f32 to vector<48x32xf32>
    %62 = arith.mulf %61, %58 : vector<48x32xf32>
    %63 = arith.select %60, %58, %62 : vector<48x32xi1>, vector<48x32xf32>
    %c0_46 = arith.constant 0 : index
    %c0_47 = arith.constant 0 : index
    %c0_48 = arith.constant 0 : index
    %64 = vector.load %arg19[%c0_46, %c0_47, %c0_48] : memref<2x32x32xf32, #tpu.memory_space<vmem>>, vector<1x32x32xf32>
    %65 = vector.shape_cast %64 : vector<1x32x32xf32> to vector<32x32xf32>
    %cst_49 = arith.constant dense<0.000000e+00> : vector<48x32xf32>
    %66 = tpu.matmul %63, %65, %cst_49 {dimension_numbers = #tpu.dot_dimension_numbers<[1], [0], [0], [1], [0, 0, 1, 1], [], []>} : vector<48x32xf32>, vector<32x32xf32>, vector<48x32xf32> -> vector<48x32xf32>
    %c0_50 = arith.constant 0 : index
    %c0_51 = arith.constant 0 : index
    %c0_52 = arith.constant 0 : index
    %67 = vector.load %arg20[%c0_50, %c0_51, %c0_52] : memref<2x1x32xf32, #tpu.memory_space<vmem>>, vector<1x1x32xf32>
    %68 = vector.shape_cast %67 : vector<1x1x32xf32> to vector<1x32xf32>
    %69 = vector.broadcast %68 : vector<1x32xf32> to vector<48x32xf32>
    %70 = arith.addf %66, %69 : vector<48x32xf32>
    %cst_53 = arith.constant 0.000000e+00 : f32
    %71 = vector.broadcast %cst_53 : f32 to vector<48x32xf32>
    %72 = arith.cmpf oge, %70, %71 : vector<48x32xf32>
    %cst_54 = arith.constant 0.00999999977 : f32
    %73 = vector.broadcast %cst_54 : f32 to vector<48x32xf32>
    %74 = arith.mulf %73, %70 : vector<48x32xf32>
    %75 = arith.select %72, %70, %74 : vector<48x32xi1>, vector<48x32xf32>
    %76 = arith.truncf %49 : vector<32x32xf32> to vector<32x32xbf16>
    %cst_55 = arith.constant dense<0.000000e+00> : vector<48x32xf32>
    %77 = tpu.matmul %34, %76, %cst_55 {dimension_numbers = #tpu.dot_dimension_numbers<[1], [0], [0], [1], [0, 0, 1, 1], [], []>} : vector<48x32xbf16>, vector<32x32xbf16>, vector<48x32xf32> -> vector<48x32xf32>
    %78 = arith.addf %77, %75 : vector<48x32xf32>
    %c0_56 = arith.constant 0 : index
    %c0_57 = arith.constant 0 : index
    %c0_58 = arith.constant 0 : index
    %79 = vector.load %arg21[%c0_56, %c0_57, %c0_58] : memref<2x32x32xf32, #tpu.memory_space<vmem>>, vector<1x32x32xf32>
    %80 = vector.shape_cast %79 : vector<1x32x32xf32> to vector<32x32xf32>
    %cst_59 = arith.constant dense<0.000000e+00> : vector<48x32xf32>
    %81 = tpu.matmul %78, %80, %cst_59 {dimension_numbers = #tpu.dot_dimension_numbers<[1], [0], [0], [1], [0, 0, 1, 1], [], []>} : vector<48x32xf32>, vector<32x32xf32>, vector<48x32xf32> -> vector<48x32xf32>
    %c0_60 = arith.constant 0 : index
    %c0_61 = arith.constant 0 : index
    %c0_62 = arith.constant 0 : index
    %82 = vector.load %arg22[%c0_60, %c0_61, %c0_62] : memref<2x1x32xf32, #tpu.memory_space<vmem>>, vector<1x1x32xf32>
    %83 = vector.shape_cast %82 : vector<1x1x32xf32> to vector<1x32xf32>
    %84 = vector.broadcast %83 : vector<1x32xf32> to vector<48x32xf32>
    %85 = arith.addf %81, %84 : vector<48x32xf32>
    %cst_63 = arith.constant 0.000000e+00 : f32
    %86 = vector.broadcast %cst_63 : f32 to vector<48x32xf32>
    %87 = arith.cmpf oge, %85, %86 : vector<48x32xf32>
    %cst_64 = arith.constant 0.00999999977 : f32
    %88 = vector.broadcast %cst_64 : f32 to vector<48x32xf32>
    %89 = arith.mulf %88, %85 : vector<48x32xf32>
    %90 = arith.select %87, %85, %89 : vector<48x32xi1>, vector<48x32xf32>
    %c0_65 = arith.constant 0 : index
    %c0_66 = arith.constant 0 : index
    %c0_67 = arith.constant 0 : index
    %91 = vector.load %arg23[%c0_65, %c0_66, %c0_67] : memref<2x32x32xf32, #tpu.memory_space<vmem>>, vector<1x32x32xf32>
    %92 = vector.shape_cast %91 : vector<1x32x32xf32> to vector<32x32xf32>
    %cst_68 = arith.constant dense<0.000000e+00> : vector<48x32xf32>
    %93 = tpu.matmul %90, %92, %cst_68 {dimension_numbers = #tpu.dot_dimension_numbers<[1], [0], [0], [1], [0, 0, 1, 1], [], []>} : vector<48x32xf32>, vector<32x32xf32>, vector<48x32xf32> -> vector<48x32xf32>
    %c0_69 = arith.constant 0 : index
    %c0_70 = arith.constant 0 : index
    %c0_71 = arith.constant 0 : index
    %94 = vector.load %arg24[%c0_69, %c0_70, %c0_71] : memref<2x1x32xf32, #tpu.memory_space<vmem>>, vector<1x1x32xf32>
    %95 = vector.shape_cast %94 : vector<1x1x32xf32> to vector<1x32xf32>
    %96 = vector.broadcast %95 : vector<1x32xf32> to vector<48x32xf32>
    %97 = arith.addf %93, %96 : vector<48x32xf32>
    %98 = arith.truncf %97 : vector<48x32xf32> to vector<48x32xbf16>
    %cst_72 = arith.constant dense<0.000000e+00> : vector<32x32xf32>
    %99 = tpu.matmul %42, %98, %cst_72 {dimension_numbers = #tpu.dot_dimension_numbers<[1], [0], [0], [1], [0, 0, 1, 1], [], []>} : vector<32x48xbf16>, vector<48x32xbf16>, vector<32x32xf32> -> vector<32x32xf32>
    %cst_73 = arith.constant dense<0.000000e+00> : vector<32x32xf32>
    %100 = tpu.matmul %50, %50, %cst_73 {dimension_numbers = #tpu.dot_dimension_numbers<[1], [1], [0], [0], [0, 0, 1, 0], [], []>} : vector<32x32xf32>, vector<32x32xf32>, vector<32x32xf32> -> vector<32x32xf32>
    %cst_74 = arith.constant 0.176776692 : f32
    %101 = vector.broadcast %cst_74 : f32 to vector<32x32xf32>
    %102 = arith.mulf %100, %101 : vector<32x32xf32>
    %cst_75 = arith.constant -1.000000e+30 : f32
    %103 = vector.broadcast %cst_75 : f32 to vector<32x32xf32>
    %104 = arith.select %45, %102, %103 : vector<32x32xi1>, vector<32x32xf32>
    %cst_76 = arith.constant dense<0xFF800000> : vector<32xf32>
    %105 = vector.multi_reduction <maximumf>, %104, %cst_76 [1] : vector<32x32xf32> to vector<32xf32>
    %106 = vector.shape_cast %105 : vector<32xf32> to vector<32x1xf32>
    %107 = vector.broadcast %106 : vector<32x1xf32> to vector<32x32xf32>
    %108 = arith.subf %104, %107 : vector<32x32xf32>
    %109 = math.exp %108 : vector<32x32xf32>
    %110 = arith.mulf %43, %109 : vector<32x32xf32>
    %cst_77 = arith.constant dense<0.000000e+00> : vector<32xf32>
    %111 = vector.multi_reduction <add>, %110, %cst_77 [1] : vector<32x32xf32> to vector<32xf32>
    %112 = vector.shape_cast %111 : vector<32xf32> to vector<32x1xf32>
    %cst_78 = arith.constant dense<0.000000e+00> : vector<32x32xf32>
    %113 = tpu.matmul %110, %51, %cst_78 {dimension_numbers = #tpu.dot_dimension_numbers<[1], [0], [0], [1], [0, 0, 1, 1], [], []>} : vector<32x32xf32>, vector<32x32xf32>, vector<32x32xf32> -> vector<32x32xf32>
    %cst_79 = arith.constant 0.000000e+00 : f32
    %114 = vector.broadcast %cst_79 : f32 to vector<32x1xf32>
    %115 = arith.cmpf ogt, %112, %114 : vector<32x1xf32>
    %cst_80 = arith.constant 1.000000e+00 : f32
    %116 = vector.broadcast %cst_80 : f32 to vector<32x1xf32>
    %117 = arith.select %115, %112, %116 : vector<32x1xi1>, vector<32x1xf32>
    %118 = tpu.reciprocal %117 {approx = true} : vector<32x1xf32> -> vector<32x1xf32>
    %cst_81 = arith.constant 0.000000e+00 : f32
    %119 = vector.broadcast %cst_81 : f32 to vector<32x1xf32>
    %120 = arith.cmpf ogt, %112, %119 : vector<32x1xf32>
    %121 = vector.broadcast %118 : vector<32x1xf32> to vector<32x32xf32>
    %122 = arith.mulf %113, %121 : vector<32x32xf32>
    %cst_82 = arith.constant 0.000000e+00 : f32
    %123 = vector.shape_cast %120 : vector<32x1xi1> to vector<32x1xi1>
    %124 = vector.broadcast %123 : vector<32x1xi1> to vector<32x32xi1>
    %125 = vector.broadcast %cst_82 : f32 to vector<32x32xf32>
    %126 = arith.select %124, %122, %125 : vector<32x32xi1>, vector<32x32xf32>
    %127 = arith.addf %17, %99 : vector<32x32xf32>
    %128 = arith.addf %127, %126 : vector<32x32xf32>
    %cst_83 = arith.constant dense<0.000000e+00> : vector<32xf32>
    %129 = vector.multi_reduction <add>, %128, %cst_83 [1] : vector<32x32xf32> to vector<32xf32>
    %130 = vector.shape_cast %129 : vector<32xf32> to vector<32x1xf32>
    %cst_84 = arith.constant 3.200000e+01 : f32
    %131 = vector.broadcast %cst_84 : f32 to vector<32x1xf32>
    %132 = arith.divf %130, %131 : vector<32x1xf32>
    %133 = vector.broadcast %132 : vector<32x1xf32> to vector<32x32xf32>
    %134 = arith.subf %128, %133 : vector<32x32xf32>
    %135 = arith.mulf %134, %134 : vector<32x32xf32>
    %cst_85 = arith.constant dense<0.000000e+00> : vector<32xf32>
    %136 = vector.multi_reduction <add>, %135, %cst_85 [1] : vector<32x32xf32> to vector<32xf32>
    %137 = vector.shape_cast %136 : vector<32xf32> to vector<32x1xf32>
    %cst_86 = arith.constant 3.200000e+01 : f32
    %138 = vector.broadcast %cst_86 : f32 to vector<32x1xf32>
    %139 = arith.divf %137, %138 : vector<32x1xf32>
    %140 = vector.broadcast %132 : vector<32x1xf32> to vector<32x32xf32>
    %141 = arith.subf %128, %140 : vector<32x32xf32>
    %cst_87 = arith.constant 9.99999974E-6 : f32
    %142 = vector.broadcast %cst_87 : f32 to vector<32x1xf32>
    %143 = arith.addf %139, %142 : vector<32x1xf32>
    %144 = math.rsqrt %143 : vector<32x1xf32>
    %145 = vector.broadcast %144 : vector<32x1xf32> to vector<32x32xf32>
    %146 = arith.mulf %141, %145 : vector<32x32xf32>
    %c0_88 = arith.constant 0 : index
    %c0_89 = arith.constant 0 : index
    %c0_90 = arith.constant 0 : index
    %147 = vector.load %arg25[%c0_88, %c0_89, %c0_90] : memref<2x1x32xf32, #tpu.memory_space<vmem>>, vector<1x1x32xf32>
    %148 = vector.shape_cast %147 : vector<1x1x32xf32> to vector<1x32xf32>
    %149 = vector.broadcast %148 : vector<1x32xf32> to vector<32x32xf32>
    %150 = arith.mulf %146, %149 : vector<32x32xf32>
    %c0_91 = arith.constant 0 : index
    %c0_92 = arith.constant 0 : index
    %c0_93 = arith.constant 0 : index
    %151 = vector.load %arg26[%c0_91, %c0_92, %c0_93] : memref<2x1x32xf32, #tpu.memory_space<vmem>>, vector<1x1x32xf32>
    %152 = vector.shape_cast %151 : vector<1x1x32xf32> to vector<1x32xf32>
    %153 = vector.broadcast %152 : vector<1x32xf32> to vector<32x32xf32>
    %154 = arith.addf %150, %153 : vector<32x32xf32>
    %c1 = arith.constant 1 : index
    %c0_94 = arith.constant 0 : index
    %c0_95 = arith.constant 0 : index
    %155 = vector.load %arg16[%c1, %c0_94, %c0_95] : memref<2x32x96xf32, #tpu.memory_space<vmem>>, vector<1x32x96xf32>
    %156 = vector.shape_cast %155 : vector<1x32x96xf32> to vector<32x96xf32>
    %cst_96 = arith.constant dense<0.000000e+00> : vector<32x96xf32>
    %157 = tpu.matmul %154, %156, %cst_96 {dimension_numbers = #tpu.dot_dimension_numbers<[1], [0], [0], [1], [0, 0, 1, 1], [], []>} : vector<32x32xf32>, vector<32x96xf32>, vector<32x96xf32> -> vector<32x96xf32>
    %158 = vector.extract_strided_slice %157 {offsets = [0, 0], sizes = [32, 32], strides = [1, 1]} : vector<32x96xf32> to vector<32x32xf32>
    %159 = vector.extract_strided_slice %157 {offsets = [0, 32], sizes = [32, 32], strides = [1, 1]} : vector<32x96xf32> to vector<32x32xf32>
    %160 = vector.extract_strided_slice %157 {offsets = [0, 64], sizes = [32, 32], strides = [1, 1]} : vector<32x96xf32> to vector<32x32xf32>
    %c1_97 = arith.constant 1 : index
    %c0_98 = arith.constant 0 : index
    %c0_99 = arith.constant 0 : index
    %161 = vector.load %arg17[%c1_97, %c0_98, %c0_99] : memref<2x32x32xf32, #tpu.memory_space<vmem>>, vector<1x32x32xf32>
    %162 = vector.shape_cast %161 : vector<1x32x32xf32> to vector<32x32xf32>
    %cst_100 = arith.constant dense<0.000000e+00> : vector<48x32xf32>
    %163 = tpu.matmul %26, %162, %cst_100 {dimension_numbers = #tpu.dot_dimension_numbers<[1], [0], [0], [1], [0, 0, 1, 1], [], []>} : vector<48x32xf32>, vector<32x32xf32>, vector<48x32xf32> -> vector<48x32xf32>
    %c1_101 = arith.constant 1 : index
    %c0_102 = arith.constant 0 : index
    %c0_103 = arith.constant 0 : index
    %164 = vector.load %arg18[%c1_101, %c0_102, %c0_103] : memref<2x1x32xf32, #tpu.memory_space<vmem>>, vector<1x1x32xf32>
    %165 = vector.shape_cast %164 : vector<1x1x32xf32> to vector<1x32xf32>
    %166 = vector.broadcast %165 : vector<1x32xf32> to vector<48x32xf32>
    %167 = arith.addf %163, %166 : vector<48x32xf32>
    %cst_104 = arith.constant 0.000000e+00 : f32
    %168 = vector.broadcast %cst_104 : f32 to vector<48x32xf32>
    %169 = arith.cmpf oge, %167, %168 : vector<48x32xf32>
    %cst_105 = arith.constant 0.00999999977 : f32
    %170 = vector.broadcast %cst_105 : f32 to vector<48x32xf32>
    %171 = arith.mulf %170, %167 : vector<48x32xf32>
    %172 = arith.select %169, %167, %171 : vector<48x32xi1>, vector<48x32xf32>
    %c1_106 = arith.constant 1 : index
    %c0_107 = arith.constant 0 : index
    %c0_108 = arith.constant 0 : index
    %173 = vector.load %arg19[%c1_106, %c0_107, %c0_108] : memref<2x32x32xf32, #tpu.memory_space<vmem>>, vector<1x32x32xf32>
    %174 = vector.shape_cast %173 : vector<1x32x32xf32> to vector<32x32xf32>
    %cst_109 = arith.constant dense<0.000000e+00> : vector<48x32xf32>
    %175 = tpu.matmul %172, %174, %cst_109 {dimension_numbers = #tpu.dot_dimension_numbers<[1], [0], [0], [1], [0, 0, 1, 1], [], []>} : vector<48x32xf32>, vector<32x32xf32>, vector<48x32xf32> -> vector<48x32xf32>
    %c1_110 = arith.constant 1 : index
    %c0_111 = arith.constant 0 : index
    %c0_112 = arith.constant 0 : index
    %176 = vector.load %arg20[%c1_110, %c0_111, %c0_112] : memref<2x1x32xf32, #tpu.memory_space<vmem>>, vector<1x1x32xf32>
    %177 = vector.shape_cast %176 : vector<1x1x32xf32> to vector<1x32xf32>
    %178 = vector.broadcast %177 : vector<1x32xf32> to vector<48x32xf32>
    %179 = arith.addf %175, %178 : vector<48x32xf32>
    %cst_113 = arith.constant 0.000000e+00 : f32
    %180 = vector.broadcast %cst_113 : f32 to vector<48x32xf32>
    %181 = arith.cmpf oge, %179, %180 : vector<48x32xf32>
    %cst_114 = arith.constant 0.00999999977 : f32
    %182 = vector.broadcast %cst_114 : f32 to vector<48x32xf32>
    %183 = arith.mulf %182, %179 : vector<48x32xf32>
    %184 = arith.select %181, %179, %183 : vector<48x32xi1>, vector<48x32xf32>
    %185 = arith.truncf %158 : vector<32x32xf32> to vector<32x32xbf16>
    %cst_115 = arith.constant dense<0.000000e+00> : vector<48x32xf32>
    %186 = tpu.matmul %34, %185, %cst_115 {dimension_numbers = #tpu.dot_dimension_numbers<[1], [0], [0], [1], [0, 0, 1, 1], [], []>} : vector<48x32xbf16>, vector<32x32xbf16>, vector<48x32xf32> -> vector<48x32xf32>
    %187 = arith.addf %186, %184 : vector<48x32xf32>
    %c1_116 = arith.constant 1 : index
    %c0_117 = arith.constant 0 : index
    %c0_118 = arith.constant 0 : index
    %188 = vector.load %arg21[%c1_116, %c0_117, %c0_118] : memref<2x32x32xf32, #tpu.memory_space<vmem>>, vector<1x32x32xf32>
    %189 = vector.shape_cast %188 : vector<1x32x32xf32> to vector<32x32xf32>
    %cst_119 = arith.constant dense<0.000000e+00> : vector<48x32xf32>
    %190 = tpu.matmul %187, %189, %cst_119 {dimension_numbers = #tpu.dot_dimension_numbers<[1], [0], [0], [1], [0, 0, 1, 1], [], []>} : vector<48x32xf32>, vector<32x32xf32>, vector<48x32xf32> -> vector<48x32xf32>
    %c1_120 = arith.constant 1 : index
    %c0_121 = arith.constant 0 : index
    %c0_122 = arith.constant 0 : index
    %191 = vector.load %arg22[%c1_120, %c0_121, %c0_122] : memref<2x1x32xf32, #tpu.memory_space<vmem>>, vector<1x1x32xf32>
    %192 = vector.shape_cast %191 : vector<1x1x32xf32> to vector<1x32xf32>
    %193 = vector.broadcast %192 : vector<1x32xf32> to vector<48x32xf32>
    %194 = arith.addf %190, %193 : vector<48x32xf32>
    %cst_123 = arith.constant 0.000000e+00 : f32
    %195 = vector.broadcast %cst_123 : f32 to vector<48x32xf32>
    %196 = arith.cmpf oge, %194, %195 : vector<48x32xf32>
    %cst_124 = arith.constant 0.00999999977 : f32
    %197 = vector.broadcast %cst_124 : f32 to vector<48x32xf32>
    %198 = arith.mulf %197, %194 : vector<48x32xf32>
    %199 = arith.select %196, %194, %198 : vector<48x32xi1>, vector<48x32xf32>
    %c1_125 = arith.constant 1 : index
    %c0_126 = arith.constant 0 : index
    %c0_127 = arith.constant 0 : index
    %200 = vector.load %arg23[%c1_125, %c0_126, %c0_127] : memref<2x32x32xf32, #tpu.memory_space<vmem>>, vector<1x32x32xf32>
    %201 = vector.shape_cast %200 : vector<1x32x32xf32> to vector<32x32xf32>
    %cst_128 = arith.constant dense<0.000000e+00> : vector<48x32xf32>
    %202 = tpu.matmul %199, %201, %cst_128 {dimension_numbers = #tpu.dot_dimension_numbers<[1], [0], [0], [1], [0, 0, 1, 1], [], []>} : vector<48x32xf32>, vector<32x32xf32>, vector<48x32xf32> -> vector<48x32xf32>
    %c1_129 = arith.constant 1 : index
    %c0_130 = arith.constant 0 : index
    %c0_131 = arith.constant 0 : index
    %203 = vector.load %arg24[%c1_129, %c0_130, %c0_131] : memref<2x1x32xf32, #tpu.memory_space<vmem>>, vector<1x1x32xf32>
    %204 = vector.shape_cast %203 : vector<1x1x32xf32> to vector<1x32xf32>
    %205 = vector.broadcast %204 : vector<1x32xf32> to vector<48x32xf32>
    %206 = arith.addf %202, %205 : vector<48x32xf32>
    %207 = arith.truncf %206 : vector<48x32xf32> to vector<48x32xbf16>
    %cst_132 = arith.constant dense<0.000000e+00> : vector<32x32xf32>
    %208 = tpu.matmul %42, %207, %cst_132 {dimension_numbers = #tpu.dot_dimension_numbers<[1], [0], [0], [1], [0, 0, 1, 1], [], []>} : vector<32x48xbf16>, vector<48x32xbf16>, vector<32x32xf32> -> vector<32x32xf32>
    %cst_133 = arith.constant dense<0.000000e+00> : vector<32x32xf32>
    %209 = tpu.matmul %159, %159, %cst_133 {dimension_numbers = #tpu.dot_dimension_numbers<[1], [1], [0], [0], [0, 0, 1, 0], [], []>} : vector<32x32xf32>, vector<32x32xf32>, vector<32x32xf32> -> vector<32x32xf32>
    %cst_134 = arith.constant 0.176776692 : f32
    %210 = vector.broadcast %cst_134 : f32 to vector<32x32xf32>
    %211 = arith.mulf %209, %210 : vector<32x32xf32>
    %cst_135 = arith.constant -1.000000e+30 : f32
    %212 = vector.broadcast %cst_135 : f32 to vector<32x32xf32>
    %213 = arith.select %45, %211, %212 : vector<32x32xi1>, vector<32x32xf32>
    %cst_136 = arith.constant dense<0xFF800000> : vector<32xf32>
    %214 = vector.multi_reduction <maximumf>, %213, %cst_136 [1] : vector<32x32xf32> to vector<32xf32>
    %215 = vector.shape_cast %214 : vector<32xf32> to vector<32x1xf32>
    %216 = vector.broadcast %215 : vector<32x1xf32> to vector<32x32xf32>
    %217 = arith.subf %213, %216 : vector<32x32xf32>
    %218 = math.exp %217 : vector<32x32xf32>
    %219 = arith.mulf %43, %218 : vector<32x32xf32>
    %cst_137 = arith.constant dense<0.000000e+00> : vector<32xf32>
    %220 = vector.multi_reduction <add>, %219, %cst_137 [1] : vector<32x32xf32> to vector<32xf32>
    %221 = vector.shape_cast %220 : vector<32xf32> to vector<32x1xf32>
    %cst_138 = arith.constant dense<0.000000e+00> : vector<32x32xf32>
    %222 = tpu.matmul %219, %160, %cst_138 {dimension_numbers = #tpu.dot_dimension_numbers<[1], [0], [0], [1], [0, 0, 1, 1], [], []>} : vector<32x32xf32>, vector<32x32xf32>, vector<32x32xf32> -> vector<32x32xf32>
    %cst_139 = arith.constant 0.000000e+00 : f32
    %223 = vector.broadcast %cst_139 : f32 to vector<32x1xf32>
    %224 = arith.cmpf ogt, %221, %223 : vector<32x1xf32>
    %cst_140 = arith.constant 1.000000e+00 : f32
    %225 = vector.broadcast %cst_140 : f32 to vector<32x1xf32>
    %226 = arith.select %224, %221, %225 : vector<32x1xi1>, vector<32x1xf32>
    %227 = tpu.reciprocal %226 {approx = true} : vector<32x1xf32> -> vector<32x1xf32>
    %cst_141 = arith.constant 0.000000e+00 : f32
    %228 = vector.broadcast %cst_141 : f32 to vector<32x1xf32>
    %229 = arith.cmpf ogt, %221, %228 : vector<32x1xf32>
    %230 = vector.broadcast %227 : vector<32x1xf32> to vector<32x32xf32>
    %231 = arith.mulf %222, %230 : vector<32x32xf32>
    %cst_142 = arith.constant 0.000000e+00 : f32
    %232 = vector.shape_cast %229 : vector<32x1xi1> to vector<32x1xi1>
    %233 = vector.broadcast %232 : vector<32x1xi1> to vector<32x32xi1>
    %234 = vector.broadcast %cst_142 : f32 to vector<32x32xf32>
    %235 = arith.select %233, %231, %234 : vector<32x32xi1>, vector<32x32xf32>
    %236 = arith.addf %154, %208 : vector<32x32xf32>
    %237 = arith.addf %236, %235 : vector<32x32xf32>
    %cst_143 = arith.constant dense<0.000000e+00> : vector<32xf32>
    %238 = vector.multi_reduction <add>, %237, %cst_143 [1] : vector<32x32xf32> to vector<32xf32>
    %239 = vector.shape_cast %238 : vector<32xf32> to vector<32x1xf32>
    %cst_144 = arith.constant 3.200000e+01 : f32
    %240 = vector.broadcast %cst_144 : f32 to vector<32x1xf32>
    %241 = arith.divf %239, %240 : vector<32x1xf32>
    %242 = vector.broadcast %241 : vector<32x1xf32> to vector<32x32xf32>
    %243 = arith.subf %237, %242 : vector<32x32xf32>
    %244 = arith.mulf %243, %243 : vector<32x32xf32>
    %cst_145 = arith.constant dense<0.000000e+00> : vector<32xf32>
    %245 = vector.multi_reduction <add>, %244, %cst_145 [1] : vector<32x32xf32> to vector<32xf32>
    %246 = vector.shape_cast %245 : vector<32xf32> to vector<32x1xf32>
    %cst_146 = arith.constant 3.200000e+01 : f32
    %247 = vector.broadcast %cst_146 : f32 to vector<32x1xf32>
    %248 = arith.divf %246, %247 : vector<32x1xf32>
    %249 = vector.broadcast %241 : vector<32x1xf32> to vector<32x32xf32>
    %250 = arith.subf %237, %249 : vector<32x32xf32>
    %cst_147 = arith.constant 9.99999974E-6 : f32
    %251 = vector.broadcast %cst_147 : f32 to vector<32x1xf32>
    %252 = arith.addf %248, %251 : vector<32x1xf32>
    %253 = math.rsqrt %252 : vector<32x1xf32>
    %254 = vector.broadcast %253 : vector<32x1xf32> to vector<32x32xf32>
    %255 = arith.mulf %250, %254 : vector<32x32xf32>
    %c1_148 = arith.constant 1 : index
    %c0_149 = arith.constant 0 : index
    %c0_150 = arith.constant 0 : index
    %256 = vector.load %arg25[%c1_148, %c0_149, %c0_150] : memref<2x1x32xf32, #tpu.memory_space<vmem>>, vector<1x1x32xf32>
    %257 = vector.shape_cast %256 : vector<1x1x32xf32> to vector<1x32xf32>
    %258 = vector.broadcast %257 : vector<1x32xf32> to vector<32x32xf32>
    %259 = arith.mulf %255, %258 : vector<32x32xf32>
    %c1_151 = arith.constant 1 : index
    %c0_152 = arith.constant 0 : index
    %c0_153 = arith.constant 0 : index
    %260 = vector.load %arg26[%c1_151, %c0_152, %c0_153] : memref<2x1x32xf32, #tpu.memory_space<vmem>>, vector<1x1x32xf32>
    %261 = vector.shape_cast %260 : vector<1x1x32xf32> to vector<1x32xf32>
    %262 = vector.broadcast %261 : vector<1x32xf32> to vector<32x32xf32>
    %263 = arith.addf %259, %262 : vector<32x32xf32>
    %c0_154 = arith.constant 0 : index
    %c0_155 = arith.constant 0 : index
    %264 = vector.load %arg27[%c0_154, %c0_155] : memref<32x32xf32, #tpu.memory_space<vmem>>, vector<32x32xf32>
    %cst_156 = arith.constant dense<0.000000e+00> : vector<32x32xf32>
    %265 = tpu.matmul %263, %264, %cst_156 {dimension_numbers = #tpu.dot_dimension_numbers<[1], [0], [0], [1], [0, 0, 1, 1], [], []>} : vector<32x32xf32>, vector<32x32xf32>, vector<32x32xf32> -> vector<32x32xf32>
    %c0_157 = arith.constant 0 : index
    %c0_158 = arith.constant 0 : index
    %266 = vector.load %arg28[%c0_157, %c0_158] : memref<1x32xf32, #tpu.memory_space<vmem>>, vector<1x32xf32>
    %267 = vector.broadcast %266 : vector<1x32xf32> to vector<32x32xf32>
    %268 = arith.addf %265, %267 : vector<32x32xf32>
    %cst_159 = arith.constant 0.000000e+00 : f32
    %269 = vector.broadcast %cst_159 : f32 to vector<32x32xf32>
    %270 = arith.cmpf oge, %268, %269 : vector<32x32xf32>
    %cst_160 = arith.constant 0.00999999977 : f32
    %271 = vector.broadcast %cst_160 : f32 to vector<32x32xf32>
    %272 = arith.mulf %271, %268 : vector<32x32xf32>
    %273 = arith.select %270, %268, %272 : vector<32x32xi1>, vector<32x32xf32>
    %c0_161 = arith.constant 0 : index
    %c0_162 = arith.constant 0 : index
    %274 = vector.load %arg7[%c0_161, %c0_162] : memref<1x32xi32, #tpu.memory_space<vmem>>, vector<1x32xi32>
    %275 = tpu.iota {dimensions = array<i32: 0>} : vector<4x32xi32>
    %276 = vector.broadcast %274 : vector<1x32xi32> to vector<4x32xi32>
    %277 = arith.cmpi eq, %275, %276 : vector<4x32xi32>
    %cst_163 = arith.constant 1.000000e+00 : f32
    %cst_164 = arith.constant 0.000000e+00 : f32
    %278 = vector.broadcast %cst_163 : f32 to vector<4x32xf32>
    %279 = vector.broadcast %cst_164 : f32 to vector<4x32xf32>
    %280 = arith.select %277, %278, %279 : vector<4x32xi1>, vector<4x32xf32>
    %281 = arith.truncf %280 : vector<4x32xf32> to vector<4x32xbf16>
    %282 = arith.truncf %273 : vector<32x32xf32> to vector<32x32xbf16>
    %cst_165 = arith.constant dense<0.000000e+00> : vector<4x32xf32>
    %283 = tpu.matmul %281, %282, %cst_165 {dimension_numbers = #tpu.dot_dimension_numbers<[1], [0], [0], [1], [0, 0, 1, 1], [], []>} : vector<4x32xbf16>, vector<32x32xbf16>, vector<4x32xf32> -> vector<4x32xf32>
    %c0_166 = arith.constant 0 : index
    %c0_167 = arith.constant 0 : index
    %284 = vector.load %arg9[%c0_166, %c0_167] : memref<4x1xi32, #tpu.memory_space<vmem>>, vector<4x1xi32>
    %285 = tpu.iota {dimensions = array<i32: 1>} : vector<4x4xi32>
    %286 = vector.broadcast %284 : vector<4x1xi32> to vector<4x4xi32>
    %287 = arith.cmpi eq, %286, %285 : vector<4x4xi32>
    %cst_168 = arith.constant 1.000000e+00 : f32
    %cst_169 = arith.constant 0.000000e+00 : f32
    %288 = vector.broadcast %cst_168 : f32 to vector<4x4xf32>
    %289 = vector.broadcast %cst_169 : f32 to vector<4x4xf32>
    %290 = arith.select %287, %288, %289 : vector<4x4xi1>, vector<4x4xf32>
    %cst_170 = arith.constant dense<0.000000e+00> : vector<4x32xf32>
    %291 = tpu.matmul %290, %283, %cst_170 {dimension_numbers = #tpu.dot_dimension_numbers<[1], [0], [0], [1], [0, 0, 1, 1], [], []>} : vector<4x4xf32>, vector<4x32xf32>, vector<4x32xf32> -> vector<4x32xf32>
    %c2_i32 = arith.constant 2 : i32
    %292 = vector.broadcast %c2_i32 : i32 to vector<4x1xi32>
    %293 = arith.addi %284, %292 : vector<4x1xi32>
    %294 = tpu.iota {dimensions = array<i32: 1>} : vector<4x4xi32>
    %295 = vector.broadcast %293 : vector<4x1xi32> to vector<4x4xi32>
    %296 = arith.cmpi eq, %295, %294 : vector<4x4xi32>
    %cst_171 = arith.constant 1.000000e+00 : f32
    %cst_172 = arith.constant 0.000000e+00 : f32
    %297 = vector.broadcast %cst_171 : f32 to vector<4x4xf32>
    %298 = vector.broadcast %cst_172 : f32 to vector<4x4xf32>
    %299 = arith.select %296, %297, %298 : vector<4x4xi1>, vector<4x4xf32>
    %cst_173 = arith.constant dense<0.000000e+00> : vector<4x32xf32>
    %300 = tpu.matmul %299, %283, %cst_173 {dimension_numbers = #tpu.dot_dimension_numbers<[1], [0], [0], [1], [0, 0, 1, 1], [], []>} : vector<4x4xf32>, vector<4x32xf32>, vector<4x32xf32> -> vector<4x32xf32>
    %c0_174 = arith.constant 0 : index
    %c0_175 = arith.constant 0 : index
    %301 = vector.load %arg8[%c0_174, %c0_175] : memref<4x1xi32, #tpu.memory_space<vmem>>, vector<4x1xi32>
    %302 = tpu.iota {dimensions = array<i32: 1>} : vector<4x6xi32>
    %303 = vector.broadcast %301 : vector<4x1xi32> to vector<4x6xi32>
    %304 = arith.cmpi eq, %303, %302 : vector<4x6xi32>
    %cst_176 = arith.constant 1.000000e+00 : f32
    %cst_177 = arith.constant 0.000000e+00 : f32
    %305 = vector.broadcast %cst_176 : f32 to vector<4x6xf32>
    %306 = vector.broadcast %cst_177 : f32 to vector<4x6xf32>
    %307 = arith.select %304, %305, %306 : vector<4x6xi1>, vector<4x6xf32>
    %c0_178 = arith.constant 0 : index
    %c0_179 = arith.constant 0 : index
    %308 = vector.load %arg12[%c0_178, %c0_179] : memref<6x32xf32, #tpu.memory_space<vmem>>, vector<6x32xf32>
    %cst_180 = arith.constant dense<0.000000e+00> : vector<4x32xf32>
    %309 = tpu.matmul %307, %308, %cst_180 {dimension_numbers = #tpu.dot_dimension_numbers<[1], [0], [0], [1], [0, 0, 1, 1], [], []>} : vector<4x6xf32>, vector<6x32xf32>, vector<4x32xf32> -> vector<4x32xf32>
    %c0_181 = arith.constant 0 : index
    %c0_182 = arith.constant 0 : index
    %310 = vector.load %arg29[%c0_181, %c0_182] : memref<32x64xf32, #tpu.memory_space<vmem>>, vector<32x64xf32>
    %cst_183 = arith.constant dense<0.000000e+00> : vector<4x64xf32>
    %311 = tpu.matmul %291, %310, %cst_183 {dimension_numbers = #tpu.dot_dimension_numbers<[1], [0], [0], [1], [0, 0, 1, 1], [], []>} : vector<4x32xf32>, vector<32x64xf32>, vector<4x64xf32> -> vector<4x64xf32>
    %c0_184 = arith.constant 0 : index
    %c0_185 = arith.constant 0 : index
    %312 = vector.load %arg29[%c0_184, %c0_185] : memref<32x64xf32, #tpu.memory_space<vmem>>, vector<32x64xf32>
    %cst_186 = arith.constant dense<0.000000e+00> : vector<4x64xf32>
    %313 = tpu.matmul %300, %312, %cst_186 {dimension_numbers = #tpu.dot_dimension_numbers<[1], [0], [0], [1], [0, 0, 1, 1], [], []>} : vector<4x32xf32>, vector<32x64xf32>, vector<4x64xf32> -> vector<4x64xf32>
    %314 = vector.extract_strided_slice %311 {offsets = [0, 0], sizes = [4, 32], strides = [1, 1]} : vector<4x64xf32> to vector<4x32xf32>
    %315 = vector.extract_strided_slice %311 {offsets = [0, 32], sizes = [4, 32], strides = [1, 1]} : vector<4x64xf32> to vector<4x32xf32>
    %316 = vector.extract_strided_slice %313 {offsets = [0, 0], sizes = [4, 32], strides = [1, 1]} : vector<4x64xf32> to vector<4x32xf32>
    %317 = vector.extract_strided_slice %313 {offsets = [0, 32], sizes = [4, 32], strides = [1, 1]} : vector<4x64xf32> to vector<4x32xf32>
    %318 = arith.addf %314, %309 : vector<4x32xf32>
    %319 = arith.subf %318, %317 : vector<4x32xf32>
    %320 = arith.addf %316, %309 : vector<4x32xf32>
    %321 = arith.subf %320, %315 : vector<4x32xf32>
    %322 = arith.mulf %319, %319 : vector<4x32xf32>
    %cst_187 = arith.constant dense<0.000000e+00> : vector<4xf32>
    %323 = vector.multi_reduction <add>, %322, %cst_187 [1] : vector<4x32xf32> to vector<4xf32>
    %324 = vector.shape_cast %323 : vector<4xf32> to vector<4x1xf32>
    %325 = math.sqrt %324 : vector<4x1xf32>
    %326 = arith.mulf %321, %321 : vector<4x32xf32>
    %cst_188 = arith.constant dense<0.000000e+00> : vector<4xf32>
    %327 = vector.multi_reduction <add>, %326, %cst_188 [1] : vector<4x32xf32> to vector<4xf32>
    %328 = vector.shape_cast %327 : vector<4xf32> to vector<4x1xf32>
    %329 = math.sqrt %328 : vector<4x1xf32>
    %330 = arith.addf %325, %329 : vector<4x1xf32>
    %c0_189 = arith.constant 0 : index
    %c0_190 = arith.constant 0 : index
    %331 = vector.load %arg30[%c0_189, %c0_190] : memref<4x1xf32, #tpu.memory_space<vmem>>, vector<4x1xf32>
    tpu.vector_store %arg30[%c0_189, %c0_190], %330 {strides = array<i32>} : memref<4x1xf32, #tpu.memory_space<vmem>>, vector<4x1xf32>,
    return
  }
  func.func @transform_0(%arg0: i32) -> (i32, i32) {
    %c0_i32 = arith.constant 0 : i32
    %c0_i32_0 = arith.constant 0 : i32
    %c0_i32_1 = arith.constant 0 : i32
    return %c0_i32, %c0_i32_0 : i32, i32
  }
  func.func @transform_1(%arg0: i32) -> (i32, i32) {
    %c0_i32 = arith.constant 0 : i32
    %c0_i32_0 = arith.constant 0 : i32
    %c0_i32_1 = arith.constant 0 : i32
    return %c0_i32, %c0_i32_0 : i32, i32
  }
  func.func @transform_2(%arg0: i32) -> (i32, i32) {
    %c0_i32 = arith.constant 0 : i32
    %c0_i32_0 = arith.constant 0 : i32
    %c0_i32_1 = arith.constant 0 : i32
    return %c0_i32, %c0_i32_0 : i32, i32
  }
  func.func @transform_3(%arg0: i32) -> (i32, i32) {
    %c0_i32 = arith.constant 0 : i32
    %c0_i32_0 = arith.constant 0 : i32
    %c0_i32_1 = arith.constant 0 : i32
    return %c0_i32, %c0_i32_0 : i32, i32
  }
  func.func @transform_4(%arg0: i32) -> (i32, i32) {
    %c0_i32 = arith.constant 0 : i32
    %c0_i32_0 = arith.constant 0 : i32
    %c0_i32_1 = arith.constant 0 : i32
    return %c0_i32, %c0_i32_0 : i32, i32
  }
  func.func @transform_5(%arg0: i32) -> (i32, i32) {
    %c0_i32 = arith.constant 0 : i32
    %c0_i32_0 = arith.constant 0 : i32
    %c0_i32_1 = arith.constant 0 : i32
    return %c0_i32, %c0_i32_0 : i32, i32
  }
  func.func @transform_6(%arg0: i32) -> (i32, i32) {
    %c0_i32 = arith.constant 0 : i32
    %c0_i32_0 = arith.constant 0 : i32
    %c0_i32_1 = arith.constant 0 : i32
    return %c0_i32, %c0_i32_0 : i32, i32
  }
  func.func @transform_7(%arg0: i32) -> (i32, i32) {
    %c0_i32 = arith.constant 0 : i32
    %c0_i32_0 = arith.constant 0 : i32
    %c0_i32_1 = arith.constant 0 : i32
    return %c0_i32, %c0_i32_0 : i32, i32
  }
  func.func @transform_8(%arg0: i32) -> (i32, i32) {
    %c0_i32 = arith.constant 0 : i32
    %c0_i32_0 = arith.constant 0 : i32
    %c0_i32_1 = arith.constant 0 : i32
    return %c0_i32, %c0_i32_0 : i32, i32
  }
  func.func @transform_9(%arg0: i32) -> (i32, i32) {
    %c0_i32 = arith.constant 0 : i32
    %c0_i32_0 = arith.constant 0 : i32
    %c0_i32_1 = arith.constant 0 : i32
    return %c0_i32, %c0_i32_0 : i32, i32
  }
  func.func @transform_10(%arg0: i32) -> (i32, i32) {
    %c0_i32 = arith.constant 0 : i32
    %c0_i32_0 = arith.constant 0 : i32
    %c0_i32_1 = arith.constant 0 : i32
    return %c0_i32, %c0_i32_0 : i32, i32
  }
  func.func @transform_11(%arg0: i32) -> (i32, i32) {
    %c0_i32 = arith.constant 0 : i32
    %c0_i32_0 = arith.constant 0 : i32
    %c0_i32_1 = arith.constant 0 : i32
    return %c0_i32, %c0_i32_0 : i32, i32
  }
  func.func @transform_12(%arg0: i32) -> (i32, i32) {
    %c0_i32 = arith.constant 0 : i32
    %c0_i32_0 = arith.constant 0 : i32
    %c0_i32_1 = arith.constant 0 : i32
    return %c0_i32, %c0_i32_0 : i32, i32
  }
  func.func @transform_13(%arg0: i32) -> (i32, i32) {
    %c0_i32 = arith.constant 0 : i32
    %c0_i32_0 = arith.constant 0 : i32
    %c0_i32_1 = arith.constant 0 : i32
    return %c0_i32, %c0_i32_0 : i32, i32
  }
  func.func @transform_14(%arg0: i32) -> (i32, i32) {
    %c0_i32 = arith.constant 0 : i32
    %c0_i32_0 = arith.constant 0 : i32
    %c0_i32_1 = arith.constant 0 : i32
    return %c0_i32, %c0_i32_0 : i32, i32
  }
  func.func @transform_15(%arg0: i32) -> (i32, i32, i32) {
    %c0_i32 = arith.constant 0 : i32
    %c0_i32_0 = arith.constant 0 : i32
    %c0_i32_1 = arith.constant 0 : i32
    %c0_i32_2 = arith.constant 0 : i32
    return %c0_i32, %c0_i32_0, %c0_i32_1 : i32, i32, i32
  }
  func.func @transform_16(%arg0: i32) -> (i32, i32, i32) {
    %c0_i32 = arith.constant 0 : i32
    %c0_i32_0 = arith.constant 0 : i32
    %c0_i32_1 = arith.constant 0 : i32
    %c0_i32_2 = arith.constant 0 : i32
    return %c0_i32, %c0_i32_0, %c0_i32_1 : i32, i32, i32
  }
  func.func @transform_17(%arg0: i32) -> (i32, i32, i32) {
    %c0_i32 = arith.constant 0 : i32
    %c0_i32_0 = arith.constant 0 : i32
    %c0_i32_1 = arith.constant 0 : i32
    %c0_i32_2 = arith.constant 0 : i32
    return %c0_i32, %c0_i32_0, %c0_i32_1 : i32, i32, i32
  }
  func.func @transform_18(%arg0: i32) -> (i32, i32, i32) {
    %c0_i32 = arith.constant 0 : i32
    %c0_i32_0 = arith.constant 0 : i32
    %c0_i32_1 = arith.constant 0 : i32
    %c0_i32_2 = arith.constant 0 : i32
    return %c0_i32, %c0_i32_0, %c0_i32_1 : i32, i32, i32
  }
  func.func @transform_19(%arg0: i32) -> (i32, i32, i32) {
    %c0_i32 = arith.constant 0 : i32
    %c0_i32_0 = arith.constant 0 : i32
    %c0_i32_1 = arith.constant 0 : i32
    %c0_i32_2 = arith.constant 0 : i32
    return %c0_i32, %c0_i32_0, %c0_i32_1 : i32, i32, i32
  }
  func.func @transform_20(%arg0: i32) -> (i32, i32, i32) {
    %c0_i32 = arith.constant 0 : i32
    %c0_i32_0 = arith.constant 0 : i32
    %c0_i32_1 = arith.constant 0 : i32
    %c0_i32_2 = arith.constant 0 : i32
    return %c0_i32, %c0_i32_0, %c0_i32_1 : i32, i32, i32
  }
  func.func @transform_21(%arg0: i32) -> (i32, i32, i32) {
    %c0_i32 = arith.constant 0 : i32
    %c0_i32_0 = arith.constant 0 : i32
    %c0_i32_1 = arith.constant 0 : i32
    %c0_i32_2 = arith.constant 0 : i32
    return %c0_i32, %c0_i32_0, %c0_i32_1 : i32, i32, i32
  }
  func.func @transform_22(%arg0: i32) -> (i32, i32, i32) {
    %c0_i32 = arith.constant 0 : i32
    %c0_i32_0 = arith.constant 0 : i32
    %c0_i32_1 = arith.constant 0 : i32
    %c0_i32_2 = arith.constant 0 : i32
    return %c0_i32, %c0_i32_0, %c0_i32_1 : i32, i32, i32
  }
  func.func @transform_23(%arg0: i32) -> (i32, i32, i32) {
    %c0_i32 = arith.constant 0 : i32
    %c0_i32_0 = arith.constant 0 : i32
    %c0_i32_1 = arith.constant 0 : i32
    %c0_i32_2 = arith.constant 0 : i32
    return %c0_i32, %c0_i32_0, %c0_i32_1 : i32, i32, i32
  }
  func.func @transform_24(%arg0: i32) -> (i32, i32, i32) {
    %c0_i32 = arith.constant 0 : i32
    %c0_i32_0 = arith.constant 0 : i32
    %c0_i32_1 = arith.constant 0 : i32
    %c0_i32_2 = arith.constant 0 : i32
    return %c0_i32, %c0_i32_0, %c0_i32_1 : i32, i32, i32
  }
  func.func @transform_25(%arg0: i32) -> (i32, i32, i32) {
    %c0_i32 = arith.constant 0 : i32
    %c0_i32_0 = arith.constant 0 : i32
    %c0_i32_1 = arith.constant 0 : i32
    %c0_i32_2 = arith.constant 0 : i32
    return %c0_i32, %c0_i32_0, %c0_i32_1 : i32, i32, i32
  }
  func.func @transform_26(%arg0: i32) -> (i32, i32) {
    %c0_i32 = arith.constant 0 : i32
    %c0_i32_0 = arith.constant 0 : i32
    %c0_i32_1 = arith.constant 0 : i32
    return %c0_i32, %c0_i32_0 : i32, i32
  }
  func.func @transform_27(%arg0: i32) -> (i32, i32) {
    %c0_i32 = arith.constant 0 : i32
    %c0_i32_0 = arith.constant 0 : i32
    %c0_i32_1 = arith.constant 0 : i32
    return %c0_i32, %c0_i32_0 : i32, i32
  }
  func.func @transform_28(%arg0: i32) -> (i32, i32) {
    %c0_i32 = arith.constant 0 : i32
    %c0_i32_0 = arith.constant 0 : i32
    %c0_i32_1 = arith.constant 0 : i32
    return %c0_i32, %c0_i32_0 : i32, i32
  }
  func.func @transform_29(%arg0: i32) -> (i32, i32) {
    %c0_i32 = arith.constant 0 : i32
    %c0_i32_0 = arith.constant 0 : i32
    %c0_i32_1 = arith.constant 0 : i32
    return %c0_i32, %c0_i32_0 : i32, i32
  }
}

</mosaic_0001>

<llo_original>
// kernel: ddi_forward.1
$region0: #{ddi_forward.1}
  #allocation0 [shape = 'u32[]', space=smem, size = 0x4, offset = 0x4, fixed_abs, tag = 'smem constant byte address 0x4 - core index']
  #allocation1 [shape = 'u32[72,128]{1,0:T(1,128)}', space=vmem, size = 0x9000, scoped, tag = 'internal scratch']
  %s0 = inlined_call_operand.smem [shape: u32[30], index: -1, kind: input, shape index: {}]
  %s1 = sld [smem:[%s0]]
  %s2 = scalar_lea.smem %s0, 1
  %s3 = sld [smem:[%s2]]
  %s4 = scalar_lea.smem %s0, 2
  %s5 = sld [smem:[%s4]]
  %s6 = scalar_lea.smem %s0, 3
  %s7 = sld [smem:[%s6]]
  %s8 = scalar_lea.smem %s0, 4
  %s9 = sld [smem:[%s8]]
  %s10 = scalar_lea.smem %s0, 5
  %s11 = sld [smem:[%s10]]
  %s12 = scalar_lea.smem %s0, 6
  %s13 = sld [smem:[%s12]]
  %s14 = scalar_lea.smem %s0, 7
  %s15 = sld [smem:[%s14]]
  %s16 = scalar_lea.smem %s0, 8
  %s17 = sld [smem:[%s16]]
  %s18 = scalar_lea.smem %s0, 9
  %s19 = sld [smem:[%s18]]
  %s20 = scalar_lea.smem %s0, 10
  %s21 = sld [smem:[%s20]]
  %s22 = scalar_lea.smem %s0, 11
  %s23 = sld [smem:[%s22]]
  %s24 = scalar_lea.smem %s0, 12
  %s25 = sld [smem:[%s24]]
  %s26 = scalar_lea.smem %s0, 13
  %s27 = sld [smem:[%s26]]
  %s28 = scalar_lea.smem %s0, 14
  %s29 = sld [smem:[%s28]]
  %s30 = scalar_lea.smem %s0, 15
  %s31 = sld [smem:[%s30]]
  %s32 = scalar_lea.smem %s0, 16
  %s33 = sld [smem:[%s32]]
  %s34 = scalar_lea.smem %s0, 17
  %s35 = sld [smem:[%s34]]
  %s36 = scalar_lea.smem %s0, 18
  %s37 = sld [smem:[%s36]]
  %s38 = scalar_lea.smem %s0, 19
  %s39 = sld [smem:[%s38]]
  %s40 = scalar_lea.smem %s0, 20
  %s41 = sld [smem:[%s40]]
  %s42 = scalar_lea.smem %s0, 21
  %s43 = sld [smem:[%s42]]
  %s44 = scalar_lea.smem %s0, 22
  %s45 = sld [smem:[%s44]]
  %s46 = scalar_lea.smem %s0, 23
  %s47 = sld [smem:[%s46]]
  %s48 = scalar_lea.smem %s0, 24
  %s49 = sld [smem:[%s48]]
  %s50 = scalar_lea.smem %s0, 25
  %s51 = sld [smem:[%s50]]
  %s52 = scalar_lea.smem %s0, 26
  %s53 = sld [smem:[%s52]]
  %s54 = scalar_lea.smem %s0, 27
  %s55 = sld [smem:[%s54]]
  %s56 = scalar_lea.smem %s0, 28
  %s57 = sld [smem:[%s56]]
  %s58 = scalar_lea.smem %s0, 29
  %s59 = sld [smem:[%s58]]
  %s60 = sld [smem:[#allocation0]]
  $region126: #{ddi_forward.1} parent=0
    _
  %s62 = ssub.s32 1, %s60
  %s63 = scalar_select 0, %s62, %s60
  // Predicated region
  $region2: #{ddi_forward.1} parent=0 // pred_check
    _
  $region3: #{ddi_forward.1} parent=0 // pred_check_branch
    %65 = sbr.rel (0) target = $region5
  $region4: #{ddi_forward.1} parent=0 // pred_region
    _
  $region5: #{ddi_forward.1} parent=0 // pred_fallthru
    _
  // Predicated region
  $region6: #{ddi_forward.1} parent=0 // pred_check
    _
  $region7: #{ddi_forward.1} parent=0 // pred_check_branch
    %67 = sbr.rel (0) target = $region9
  $region8: #{ddi_forward.1} parent=0 // pred_region
    _
  $region9: #{ddi_forward.1} parent=0 // pred_fallthru
    _
  // Predicated region
  $region10: #{ddi_forward.1} parent=0 // pred_check
    _
  $region11: #{ddi_forward.1} parent=0 // pred_check_branch
    %69 = sbr.rel (0) target = $region13
  $region12: #{ddi_forward.1} parent=0 // pred_region
    _
  $region13: #{ddi_forward.1} parent=0 // pred_fallthru
    _
  // Predicated region
  $region14: #{ddi_forward.1} parent=0 // pred_check
    _
  $region15: #{ddi_forward.1} parent=0 // pred_check_branch
    %71 = sbr.rel (0) target = $region17
  $region16: #{ddi_forward.1} parent=0 // pred_region
    _
  $region17: #{ddi_forward.1} parent=0 // pred_fallthru
    _
  // Predicated region
  $region18: #{ddi_forward.1} parent=0 // pred_check
    _
  $region19: #{ddi_forward.1} parent=0 // pred_check_branch
    %73 = sbr.rel (0) target = $region21
  $region20: #{ddi_forward.1} parent=0 // pred_region
    _
  $region21: #{ddi_forward.1} parent=0 // pred_fallthru
    _
  // Predicated region
  $region22: #{ddi_forward.1} parent=0 // pred_check
    _
  $region23: #{ddi_forward.1} parent=0 // pred_check_branch
    %75 = sbr.rel (0) target = $region25
  $region24: #{ddi_forward.1} parent=0 // pred_region
    _
  $region25: #{ddi_forward.1} parent=0 // pred_fallthru
    _
  // Predicated region
  $region26: #{ddi_forward.1} parent=0 // pred_check
    _
  $region27: #{ddi_forward.1} parent=0 // pred_check_branch
    %77 = sbr.rel (0) target = $region29
  $region28: #{ddi_forward.1} parent=0 // pred_region
    _
  $region29: #{ddi_forward.1} parent=0 // pred_fallthru
    _
  // Predicated region
  $region30: #{ddi_forward.1} parent=0 // pred_check
    _
  $region31: #{ddi_forward.1} parent=0 // pred_check_branch
    %79 = sbr.rel (0) target = $region33
  $region32: #{ddi_forward.1} parent=0 // pred_region
    _
  $region33: #{ddi_forward.1} parent=0 // pred_fallthru
    _
  // Predicated region
  $region34: #{ddi_forward.1} parent=0 // pred_check
    _
  $region35: #{ddi_forward.1} parent=0 // pred_check_branch
    %81 = sbr.rel (0) target = $region37
  $region36: #{ddi_forward.1} parent=0 // pred_region
    _
  $region37: #{ddi_forward.1} parent=0 // pred_fallthru
    _
  // Predicated region
  $region38: #{ddi_forward.1} parent=0 // pred_check
    _
  $region39: #{ddi_forward.1} parent=0 // pred_check_branch
    %83 = sbr.rel (0) target = $region41
  $region40: #{ddi_forward.1} parent=0 // pred_region
    _
  $region41: #{ddi_forward.1} parent=0 // pred_fallthru
    _
  // Predicated region
  $region42: #{ddi_forward.1} parent=0 // pred_check
    _
  $region43: #{ddi_forward.1} parent=0 // pred_check_branch
    %85 = sbr.rel (0) target = $region45
  $region44: #{ddi_forward.1} parent=0 // pred_region
    _
  $region45: #{ddi_forward.1} parent=0 // pred_fallthru
    _
  // Predicated region
  $region46: #{ddi_forward.1} parent=0 // pred_check
    _
  $region47: #{ddi_forward.1} parent=0 // pred_check_branch
    %87 = sbr.rel (0) target = $region49
  $region48: #{ddi_forward.1} parent=0 // pred_region
    _
  $region49: #{ddi_forward.1} parent=0 // pred_fallthru
    _
  // Predicated region
  $region50: #{ddi_forward.1} parent=0 // pred_check
    _
  $region51: #{ddi_forward.1} parent=0 // pred_check_branch
    %89 = sbr.rel (0) target = $region53
  $region52: #{ddi_forward.1} parent=0 // pred_region
    _
  $region53: #{ddi_forward.1} parent=0 // pred_fallthru
    _
  // Predicated region
  $region54: #{ddi_forward.1} parent=0 // pred_check
    _
  $region55: #{ddi_forward.1} parent=0 // pred_check_branch
    %91 = sbr.rel (0) target = $region57
  $region56: #{ddi_forward.1} parent=0 // pred_region
    _
  $region57: #{ddi_forward.1} parent=0 // pred_fallthru
    _
  // Predicated region
  $region58: #{ddi_forward.1} parent=0 // pred_check
    _
  $region59: #{ddi_forward.1} parent=0 // pred_check_branch
    %93 = sbr.rel (0) target = $region61
  $region60: #{ddi_forward.1} parent=0 // pred_region
    _
  $region61: #{ddi_forward.1} parent=0 // pred_fallthru
    _
  // Predicated region
  $region62: #{ddi_forward.1} parent=0 // pred_check
    _
  $region63: #{ddi_forward.1} parent=0 // pred_check_branch
    %95 = sbr.rel (0) target = $region65
  $region64: #{ddi_forward.1} parent=0 // pred_region
    _
  $region65: #{ddi_forward.1} parent=0 // pred_fallthru
    _
  // Predicated region
  $region66: #{ddi_forward.1} parent=0 // pred_check
    _
  $region67: #{ddi_forward.1} parent=0 // pred_check_branch
    %97 = sbr.rel (0) target = $region69
  $region68: #{ddi_forward.1} parent=0 // pred_region
    _
  $region69: #{ddi_forward.1} parent=0 // pred_fallthru
    _
  // Predicated region
  $region70: #{ddi_forward.1} parent=0 // pred_check
    _
  $region71: #{ddi_forward.1} parent=0 // pred_check_branch
    %99 = sbr.rel (0) target = $region73
  $region72: #{ddi_forward.1} parent=0 // pred_region
    _
  $region73: #{ddi_forward.1} parent=0 // pred_fallthru
    _
  // Predicated region
  $region74: #{ddi_forward.1} parent=0 // pred_check
    _
  $region75: #{ddi_forward.1} parent=0 // pred_check_branch
    %101 = sbr.rel (0) target = $region77
  $region76: #{ddi_forward.1} parent=0 // pred_region
    _
  $region77: #{ddi_forward.1} parent=0 // pred_fallthru
    _
  // Predicated region
  $region78: #{ddi_forward.1} parent=0 // pred_check
    _
  $region79: #{ddi_forward.1} parent=0 // pred_check_branch
    %103 = sbr.rel (0) target = $region81
  $region80: #{ddi_forward.1} parent=0 // pred_region
    _
  $region81: #{ddi_forward.1} parent=0 // pred_fallthru
    _
  // Predicated region
  $region82: #{ddi_forward.1} parent=0 // pred_check
    _
  $region83: #{ddi_forward.1} parent=0 // pred_check_branch
    %105 = sbr.rel (0) target = $region85
  $region84: #{ddi_forward.1} parent=0 // pred_region
    _
  $region85: #{ddi_forward.1} parent=0 // pred_fallthru
    _
  // Predicated region
  $region86: #{ddi_forward.1} parent=0 // pred_check
    _
  $region87: #{ddi_forward.1} parent=0 // pred_check_branch
    %107 = sbr.rel (0) target = $region89
  $region88: #{ddi_forward.1} parent=0 // pred_region
    _
  $region89: #{ddi_forward.1} parent=0 // pred_fallthru
    _
  // Predicated region
  $region90: #{ddi_forward.1} parent=0 // pred_check
    _
  $region91: #{ddi_forward.1} parent=0 // pred_check_branch
    %109 = sbr.rel (0) target = $region93
  $region92: #{ddi_forward.1} parent=0 // pred_region
    _
  $region93: #{ddi_forward.1} parent=0 // pred_fallthru
    _
  // Predicated region
  $region94: #{ddi_forward.1} parent=0 // pred_check
    _
  $region95: #{ddi_forward.1} parent=0 // pred_check_branch
    %111 = sbr.rel (0) target = $region97
  $region96: #{ddi_forward.1} parent=0 // pred_region
    _
  $region97: #{ddi_forward.1} parent=0 // pred_fallthru
    _
  // Predicated region
  $region98: #{ddi_forward.1} parent=0 // pred_check
    _
  $region99: #{ddi_forward.1} parent=0 // pred_check_branch
    %113 = sbr.rel (0) target = $region101
  $region100: #{ddi_forward.1} parent=0 // pred_region
    _
  $region101: #{ddi_forward.1} parent=0 // pred_fallthru
    _
  // Predicated region
  $region102: #{ddi_forward.1} parent=0 // pred_check
    _
  $region103: #{ddi_forward.1} parent=0 // pred_check_branch
    %115 = sbr.rel (0) target = $region105
  $region104: #{ddi_forward.1} parent=0 // pred_region
    _
  $region105: #{ddi_forward.1} parent=0 // pred_fallthru
    _
  // Predicated region
  $region106: #{ddi_forward.1} parent=0 // pred_check
    _
  $region107: #{ddi_forward.1} parent=0 // pred_check_branch
    %117 = sbr.rel (0) target = $region109
  $region108: #{ddi_forward.1} parent=0 // pred_region
    _
  $region109: #{ddi_forward.1} parent=0 // pred_fallthru
    _
  // Predicated region
  $region110: #{ddi_forward.1} parent=0 // pred_check
    _
  $region111: #{ddi_forward.1} parent=0 // pred_check_branch
    %119 = sbr.rel (0) target = $region113
  $region112: #{ddi_forward.1} parent=0 // pred_region
    _
  $region113: #{ddi_forward.1} parent=0 // pred_fallthru
    _
  // Predicated region
  $region114: #{ddi_forward.1} parent=0 // pred_check
    _
  $region115: #{ddi_forward.1} parent=0 // pred_check_branch
    %121 = sbr.rel (0) target = $region117
  $region116: #{ddi_forward.1} parent=0 // pred_region
    _
  $region117: #{ddi_forward.1} parent=0 // pred_fallthru
    _
  %v123 = vld [vmem:[%s1] sm:$0xff]
  %v124 = vld [vmem:[%s1 + $0x8] sm:$0xff]
  %v125 = vld [vmem:[%s1 + $0x10] sm:$0xff]
  %v126 = vld [vmem:[%s1 + $0x18] sm:$0xff]
  %v127 = vlaneseq
  %v128 = vand.u32 %v127, 127
  %129 = vset.pattern.permute.xlu0 0
  %130 = vperm.xlu0 %129, %v123
  %v131 = vpop.permute.xlu0 %130
  %132 = vset.pattern.permute.xlu0 0
  %133 = vperm.xlu0 %132, %v124
  %v134 = vpop.permute.xlu0 %133
  %135 = vset.pattern.permute.xlu0 0
  %136 = vperm.xlu0 %135, %v125
  %v137 = vpop.permute.xlu0 %136
  %138 = vset.pattern.permute.xlu0 0
  %139 = vperm.xlu0 %138, %v126
  %v140 = vpop.permute.xlu0 %139
  %vm141 = vcmp.eq.s32.totalorder %v131, %v128
  %vm142 = vcmp.eq.s32.totalorder %v134, %v128
  %vm143 = vcmp.eq.s32.totalorder %v137, %v128
  %vm144 = vcmp.eq.s32.totalorder %v140, %v128
  %v145 = vsel %vm141, 1.0, 0.0
  %v146 = vsel %vm142, 1.0, 0.0
  %v147 = vsel %vm143, 1.0, 0.0
  %v148 = vsel %vm144, 1.0, 0.0
  %v149 = vld [vmem:[%s19] sm:$0xff]
  %v150 = vld [vmem:[%s19 + $0x8] sm:$0xff]
  %vm151 = vcmask 130048
  %v153 = vsel %vm151, %v145, 0
  %v156 = vsel %vm151, %v146, 0
  %v159 = vsel %vm151, %v147, 0
  %v162 = vsel %vm151, %v148, 0
  %164 = vmatpush.msra.mxu0 0.0
  %165 = vmatpush.msra.mxu0 0.0
  %166 = vmatpush.msra.mxu0 0.0
  %167 = vmatpush.msra.mxu0 0.0
  %168 = vmatpush.msra.mxu0 0.0
  %169 = vmatpush.msra.mxu0 0.0
  %170 = vmatpush.msra.mxu0 0.0
  %171 = vmatpush.msra.mxu0 0.0
  %172 = vmatpush.msra.mxu0 0.0
  %173 = vmatpush.msra.mxu0 0.0
  %174 = vmatpush.msra.mxu0 0.0
  %175 = vmatpush.msra.mxu0 0.0
  %176 = vmatpush.msra.mxu0 0.0
  %177 = vmatpush.msra.mxu0 0.0
  %178 = vmatpush.msra.mxu0 %v150
  %179 = vmatpush.msra.mxu0 %v149
  %180 = vmatmul.f32.gmra.mxu0 %v153
  %v181 = vpop.f32.mrf.mxu0
  %v182 = vadd.f32 0.0, %v181
  %183 = vmatmul.f32.gmra.mxu0 %v156
  %v184 = vpop.f32.mrf.mxu0
  %v185 = vadd.f32 0.0, %v184
  %186 = vmatmul.f32.gmra.mxu0 %v159
  %v187 = vpop.f32.mrf.mxu0
  %v188 = vadd.f32 0.0, %v187
  %189 = vmatmul.f32.gmra.mxu0 %v162
  %v190 = vpop.f32.mrf.mxu0
  %v191 = vadd.f32 0.0, %v190
  %192 = vdwg.mxu0
  %v193 = vld [vmem:[%s25] sm:$0xff]
  %v194 = vld [vmem:[%s25 + $0x8] sm:$0xff]
  %v195 = vld [vmem:[%s25 + $0x10] sm:$0xff]
  %v196 = vld [vmem:[%s25 + $0x18] sm:$0xff]
  %v197 = vld [vmem:[%s3] sm:$0xff]
  %v198 = vld [vmem:[%s3 + $0x8] sm:$0xff]
  %v199 = vld [vmem:[%s3 + $0x10] sm:$0xff]
  %v200 = vld [vmem:[%s3 + $0x18] sm:$0xff]
  %v201 = vld [vmem:[%s27] sm:$0xf]
  %vm202 = vcmask 31744
  %v204 = vsel %vm202, %v197, 0
  %v207 = vsel %vm202, %v198, 0
  %v210 = vsel %vm202, %v199, 0
  %v213 = vsel %vm202, %v200, 0
  %vm215 = vcmask 1043456
  %v217 = vsel %vm215, %v201, 0
  %219 = vmatpush.msra.mxu0 0.0
  %220 = vmatpush.msra.mxu0 0.0
  %221 = vmatpush.msra.mxu0 0.0
  %222 = vmatpush.msra.mxu0 0.0
  %223 = vmatpush.msra.mxu0 0.0
  %224 = vmatpush.msra.mxu0 0.0
  %225 = vmatpush.msra.mxu0 0.0
  %226 = vmatpush.msra.mxu0 0.0
  %227 = vmatpush.msra.mxu0 0.0
  %228 = vmatpush.msra.mxu0 0.0
  %229 = vmatpush.msra.mxu0 0.0
  %230 = vmatpush.msra.mxu0 0.0
  %231 = vmatpush.msra.mxu0 0.0
  %232 = vmatpush.msra.mxu0 0.0
  %233 = vmatpush.msra.mxu0 0.0
  %234 = vmatpush.msra.mxu0 %v217
  %235 = vmatmul.f32.gmra.mxu0 %v204
  %v236 = vpop.f32.mrf.mxu0
  %v237 = vadd.f32 0.0, %v236
  %238 = vmatmul.f32.gmra.mxu0 %v207
  %v239 = vpop.f32.mrf.mxu0
  %v240 = vadd.f32 0.0, %v239
  %241 = vmatmul.f32.gmra.mxu0 %v210
  %v242 = vpop.f32.mrf.mxu0
  %v243 = vadd.f32 0.0, %v242
  %244 = vmatmul.f32.gmra.mxu0 %v213
  %v245 = vpop.f32.mrf.mxu0
  %v246 = vadd.f32 0.0, %v245
  %247 = vdwg.mxu0
  %vm248 = vcmask 261120
  %v250 = vsel %vm248, %v182, 0
  %v253 = vsel %vm248, %v185, 0
  %v256 = vsel %vm248, %v188, 0
  %v259 = vsel %vm248, %v191, 0
  %261 = vmatpush.msra.mxu0 0.0
  %262 = vmatpush.msra.mxu0 0.0
  %263 = vmatpush.msra.mxu0 0.0
  %264 = vmatpush.msra.mxu0 0.0
  %265 = vmatpush.msra.mxu0 0.0
  %266 = vmatpush.msra.mxu0 0.0
  %267 = vmatpush.msra.mxu0 0.0
  %268 = vmatpush.msra.mxu0 0.0
  %269 = vmatpush.msra.mxu0 0.0
  %270 = vmatpush.msra.mxu0 0.0
  %271 = vmatpush.msra.mxu0 0.0
  %272 = vmatpush.msra.mxu0 0.0
  %273 = vmatpush.msra.mxu0 %v196
  %274 = vmatpush.msra.mxu0 %v195
  %275 = vmatpush.msra.mxu0 %v194
  %276 = vmatpush.msra.mxu0 %v193
  %277 = vmatmul.f32.gmra.mxu0 %v250
  %v278 = vpop.f32.mrf.mxu0
  %v279 = vadd.f32 %v237, %v278
  %280 = vmatmul.f32.gmra.mxu0 %v253
  %v281 = vpop.f32.mrf.mxu0
  %v282 = vadd.f32 %v240, %v281
  %283 = vmatmul.f32.gmra.mxu0 %v256
  %v284 = vpop.f32.mrf.mxu0
  %v285 = vadd.f32 %v243, %v284
  %286 = vmatmul.f32.gmra.mxu0 %v259
  %v287 = vpop.f32.mrf.mxu0
  %v288 = vadd.f32 %v246, %v287
  %289 = vdwg.mxu0
  %v290 = vld [vmem:[%s29] sm:$0x1]
  %v292 = vperm.slane %v290, 0
  %v294 = vadd.f32 %v279, %v292
  %v295 = vadd.f32 %v282, %v292
  %v296 = vadd.f32 %v285, %v292
  %v297 = vadd.f32 %v288, %v292
  %v298 = vld [vmem:[%s5] sm:$0xff]
  %v299 = vld [vmem:[%s5 + $0x8] sm:$0xff]
  %v300 = vld [vmem:[%s5 + $0x10] sm:$0xff]
  %v301 = vld [vmem:[%s5 + $0x18] sm:$0xff]
  %v302 = vld [vmem:[%s5 + $0x20] sm:$0xff]
  %v303 = vld [vmem:[%s5 + $0x28] sm:$0xff]
  %304 = vset.pattern.permute.xlu0 0
  %305 = vperm.xlu0 %304, %v298
  %v306 = vpop.permute.xlu0 %305
  %307 = vset.pattern.permute.xlu0 0
  %308 = vperm.xlu0 %307, %v299
  %v309 = vpop.permute.xlu0 %308
  %310 = vset.pattern.permute.xlu0 0
  %311 = vperm.xlu0 %310, %v300
  %v312 = vpop.permute.xlu0 %311
  %313 = vset.pattern.permute.xlu0 0
  %314 = vperm.xlu0 %313, %v301
  %v315 = vpop.permute.xlu0 %314
  %316 = vset.pattern.permute.xlu0 0
  %317 = vperm.xlu0 %316, %v302
  %v318 = vpop.permute.xlu0 %317
  %319 = vset.pattern.permute.xlu0 0
  %320 = vperm.xlu0 %319, %v303
  %v321 = vpop.permute.xlu0 %320
  %vm322 = vcmp.eq.s32.totalorder %v306, %v128
  %vm323 = vcmp.eq.s32.totalorder %v309, %v128
  %vm324 = vcmp.eq.s32.totalorder %v312, %v128
  %vm325 = vcmp.eq.s32.totalorder %v315, %v128
  %vm326 = vcmp.eq.s32.totalorder %v318, %v128
  %vm327 = vcmp.eq.s32.totalorder %v321, %v128
  %v328 = vsel %vm322, 1.0, 0.0
  %v329 = vsel %vm323, 1.0, 0.0
  %v330 = vsel %vm324, 1.0, 0.0
  %v331 = vsel %vm325, 1.0, 0.0
  %v332 = vsel %vm326, 1.0, 0.0
  %v333 = vsel %vm327, 1.0, 0.0
  %v334 = vld [vmem:[%s21] sm:$0xff]
  %vm335 = vcmask 64512
  %v337 = vsel %vm335, %v328, 0
  %v340 = vsel %vm335, %v329, 0
  %v343 = vsel %vm335, %v330, 0
  %v346 = vsel %vm335, %v331, 0
  %v349 = vsel %vm335, %v332, 0
  %v352 = vsel %vm335, %v333, 0
  %354 = vmatpush.msra.mxu0 0.0
  %355 = vmatpush.msra.mxu0 0.0
  %356 = vmatpush.msra.mxu0 0.0
  %357 = vmatpush.msra.mxu0 0.0
  %358 = vmatpush.msra.mxu0 0.0
  %359 = vmatpush.msra.mxu0 0.0
  %360 = vmatpush.msra.mxu0 0.0
  %361 = vmatpush.msra.mxu0 0.0
  %362 = vmatpush.msra.mxu0 0.0
  %363 = vmatpush.msra.mxu0 0.0
  %364 = vmatpush.msra.mxu0 0.0
  %365 = vmatpush.msra.mxu0 0.0
  %366 = vmatpush.msra.mxu0 0.0
  %367 = vmatpush.msra.mxu0 0.0
  %368 = vmatpush.msra.mxu0 0.0
  %369 = vmatpush.msra.mxu0 %v334
  %370 = vmatmul.f32.gmra.mxu0 %v337
  %v371 = vpop.f32.mrf.mxu0
  %v372 = vadd.f32 0.0, %v371
  %373 = vmatmul.f32.gmra.mxu0 %v340
  %v374 = vpop.f32.mrf.mxu0
  %v375 = vadd.f32 0.0, %v374
  %376 = vmatmul.f32.gmra.mxu0 %v343
  %v377 = vpop.f32.mrf.mxu0
  %v378 = vadd.f32 0.0, %v377
  %379 = vmatmul.f32.gmra.mxu0 %v346
  %v380 = vpop.f32.mrf.mxu0
  %v381 = vadd.f32 0.0, %v380
  %382 = vmatmul.f32.gmra.mxu0 %v349
  %v383 = vpop.f32.mrf.mxu0
  %v384 = vadd.f32 0.0, %v383
  %385 = vmatmul.f32.gmra.mxu0 %v352
  %v386 = vpop.f32.mrf.mxu0
  %v387 = vadd.f32 0.0, %v386
  %388 = vdwg.mxu0
  %v389 = vld [vmem:[%s7] sm:$0xff]
  %v390 = vld [vmem:[%s7 + $0x8] sm:$0xff]
  %v391 = vld [vmem:[%s7 + $0x10] sm:$0xff]
  %v392 = vld [vmem:[%s7 + $0x18] sm:$0xff]
  %v393 = vld [vmem:[%s7 + $0x20] sm:$0xff]
  %v394 = vld [vmem:[%s7 + $0x28] sm:$0xff]
  %395 = vset.pattern.permute.xlu0 0
  %396 = vperm.xlu0 %395, %v389
  %v397 = vpop.permute.xlu0 %396
  %398 = vset.pattern.permute.xlu0 0
  %399 = vperm.xlu0 %398, %v390
  %v400 = vpop.permute.xlu0 %399
  %401 = vset.pattern.permute.xlu0 0
  %402 = vperm.xlu0 %401, %v391
  %v403 = vpop.permute.xlu0 %402
  %404 = vset.pattern.permute.xlu0 0
  %405 = vperm.xlu0 %404, %v392
  %v406 = vpop.permute.xlu0 %405
  %407 = vset.pattern.permute.xlu0 0
  %408 = vperm.xlu0 %407, %v393
  %v409 = vpop.permute.xlu0 %408
  %410 = vset.pattern.permute.xlu0 0
  %411 = vperm.xlu0 %410, %v394
  %v412 = vpop.permute.xlu0 %411
  %vm413 = vcmp.eq.s32.totalorder %v397, %v128
  %vm414 = vcmp.eq.s32.totalorder %v400, %v128
  %vm415 = vcmp.eq.s32.totalorder %v403, %v128
  %vm416 = vcmp.eq.s32.totalorder %v406, %v128
  %vm417 = vcmp.eq.s32.totalorder %v409, %v128
  %vm418 = vcmp.eq.s32.totalorder %v412, %v128
  %v419 = vsel %vm413, 1.0, 0.0
  %v420 = vsel %vm414, 1.0, 0.0
  %v421 = vsel %vm415, 1.0, 0.0
  %v422 = vsel %vm416, 1.0, 0.0
  %v423 = vsel %vm417, 1.0, 0.0
  %v424 = vsel %vm418, 1.0, 0.0
  %v425 = vpack.c.bf16 %v420, %v419
  %v426 = vpack.c.bf16 %v422, %v421
  %v427 = vpack.c.bf16 %v424, %v423
  %v428 = vld [vmem:[%s9] sm:$0x1]
  %v429 = vlaneseq
  %v430 = vshrl.u32 %v429, 7
  %v431 = vadd.s32 %v430, 8
  %v432 = vadd.s32 %v430, 16
  %v433 = vadd.s32 %v430, 24
  %v434 = vperm.slane %v428, 0
  %vm435 = vcmp.eq.s32.totalorder %v430, %v434
  %vm436 = vcmp.eq.s32.totalorder %v431, %v434
  %vm437 = vcmp.eq.s32.totalorder %v432, %v434
  %vm438 = vcmp.eq.s32.totalorder %v433, %v434
  %v439 = vsel %vm435, 1.0, 0.0
  %v440 = vsel %vm436, 1.0, 0.0
  %v441 = vsel %vm437, 1.0, 0.0
  %v442 = vsel %vm438, 1.0, 0.0
  %v443 = vpack.c.bf16 %v440, %v439
  %v444 = vpack.c.bf16 %v442, %v441
  %v445 = vld [vmem:[%s11] sm:$0xff]
  %v446 = vld [vmem:[%s11 + $0x8] sm:$0xff]
  %v447 = vld [vmem:[%s11 + $0x10] sm:$0xff]
  %v448 = vld [vmem:[%s11 + $0x18] sm:$0xff]
  %vm449 = vcmp.gt.f32.partialorder %v445, 0.0
  %vm450 = vcmp.gt.f32.partialorder %v446, 0.0
  %vm451 = vcmp.gt.f32.partialorder %v447, 0.0
  %vm452 = vcmp.gt.f32.partialorder %v448, 0.0
  %v453 = vld [vmem:[%s31] sm:$0xff]
  %v454 = vld [vmem:[%s31 + $0x8] sm:$0xff]
  %v455 = vld [vmem:[%s31 + $0x10] sm:$0xff]
  %v456 = vld [vmem:[%s31 + $0x18] sm:$0xff]
  %v458 = vsel %vm248, %v294, 0
  %v461 = vsel %vm248, %v295, 0
  %v464 = vsel %vm248, %v296, 0
  %v467 = vsel %vm248, %v297, 0
  %469 = vmatpush.msra.mxu0 0.0
  %470 = vmatpush.msra.mxu0 0.0
  %471 = vmatpush.msra.mxu0 0.0
  %472 = vmatpush.msra.mxu0 0.0
  %473 = vmatpush.msra.mxu0 0.0
  %474 = vmatpush.msra.mxu0 0.0
  %475 = vmatpush.msra.mxu0 0.0
  %476 = vmatpush.msra.mxu0 0.0
  %477 = vmatpush.msra.mxu0 0.0
  %478 = vmatpush.msra.mxu0 0.0
  %479 = vmatpush.msra.mxu0 0.0
  %480 = vmatpush.msra.mxu0 0.0
  %481 = vmatpush.msra.mxu0 %v456
  %482 = vmatpush.msra.mxu0 %v455
  %483 = vmatpush.msra.mxu0 %v454
  %484 = vmatpush.msra.mxu0 %v453
  %485 = vmatmul.f32.gmra.mxu0 %v458
  %v486 = vpop.f32.mrf.mxu0
  %v487 = vadd.f32 0.0, %v486
  %488 = vmatmul.f32.gmra.mxu0 %v461
  %v489 = vpop.f32.mrf.mxu0
  %v490 = vadd.f32 0.0, %v489
  %491 = vmatmul.f32.gmra.mxu0 %v464
  %v492 = vpop.f32.mrf.mxu0
  %v493 = vadd.f32 0.0, %v492
  %494 = vmatmul.f32.gmra.mxu0 %v467
  %v495 = vpop.f32.mrf.mxu0
  %v496 = vadd.f32 0.0, %v495
  %497 = vdwg.mxu0
  %v498 = vld [vmem:[%s33] sm:$0xff]
  %v499 = vld [vmem:[%s33 + $0x8] sm:$0xff]
  %v500 = vld [vmem:[%s33 + $0x10] sm:$0xff]
  %v501 = vld [vmem:[%s33 + $0x18] sm:$0xff]
  %v502 = vld [vmem:[%s35] sm:$0x1]
  %v504 = vperm.slane %v502, 0
  %v507 = vsel %vm248, %v372, 0
  %v510 = vsel %vm248, %v375, 0
  %v513 = vsel %vm248, %v378, 0
  %v516 = vsel %vm248, %v381, 0
  %v519 = vsel %vm248, %v384, 0
  %v522 = vsel %vm248, %v387, 0
  %524 = vmatpush.msra.mxu0 0.0
  %525 = vmatpush.msra.mxu0 0.0
  %526 = vmatpush.msra.mxu0 0.0
  %527 = vmatpush.msra.mxu0 0.0
  %528 = vmatpush.msra.mxu0 0.0
  %529 = vmatpush.msra.mxu0 0.0
  %530 = vmatpush.msra.mxu0 0.0
  %531 = vmatpush.msra.mxu0 0.0
  %532 = vmatpush.msra.mxu0 0.0
  %533 = vmatpush.msra.mxu0 0.0
  %534 = vmatpush.msra.mxu0 0.0
  %535 = vmatpush.msra.mxu0 0.0
  %536 = vmatpush.msra.mxu0 %v501
  %537 = vmatpush.msra.mxu0 %v500
  %538 = vmatpush.msra.mxu0 %v499
  %539 = vmatpush.msra.mxu0 %v498
  %540 = vmatmul.f32.gmra.mxu0 %v507
  %v541 = vpop.f32.mrf.mxu0
  %v542 = vadd.f32 %v504, %v541
  %543 = vmatmul.f32.gmra.mxu0 %v510
  %v544 = vpop.f32.mrf.mxu0
  %v545 = vadd.f32 %v504, %v544
  %546 = vmatmul.f32.gmra.mxu0 %v513
  %v547 = vpop.f32.mrf.mxu0
  %v548 = vadd.f32 %v504, %v547
  %549 = vmatmul.f32.gmra.mxu0 %v516
  %v550 = vpop.f32.mrf.mxu0
  %v551 = vadd.f32 %v504, %v550
  %552 = vmatmul.f32.gmra.mxu0 %v519
  %v553 = vpop.f32.mrf.mxu0
  %v554 = vadd.f32 %v504, %v553
  %555 = vmatmul.f32.gmra.mxu0 %v522
  %v556 = vpop.f32.mrf.mxu0
  %v557 = vadd.f32 %v504, %v556
  %558 = vdwg.mxu0
  %vm559 = vcmp.ge.f32.partialorder %v542, 0.0
  %vm560 = vcmp.ge.f32.partialorder %v545, 0.0
  %vm561 = vcmp.ge.f32.partialorder %v548, 0.0
  %vm562 = vcmp.ge.f32.partialorder %v551, 0.0
  %vm563 = vcmp.ge.f32.partialorder %v554, 0.0
  %vm564 = vcmp.ge.f32.partialorder %v557, 0.0
  %v565 = vmul.f32 %v542, 0.01
  %v566 = vmul.f32 %v545, 0.01
  %v567 = vmul.f32 %v548, 0.01
  %v568 = vmul.f32 %v551, 0.01
  %v569 = vmul.f32 %v554, 0.01
  %v570 = vmul.f32 %v557, 0.01
  %v571 = vsel %vm559, %v542, %v565
  %v572 = vsel %vm560, %v545, %v566
  %v573 = vsel %vm561, %v548, %v567
  %v574 = vsel %vm562, %v551, %v568
  %v575 = vsel %vm563, %v554, %v569
  %v576 = vsel %vm564, %v557, %v570
  %v577 = vld [vmem:[%s37] sm:$0xff]
  %v578 = vld [vmem:[%s37 + $0x8] sm:$0xff]
  %v579 = vld [vmem:[%s37 + $0x10] sm:$0xff]
  %v580 = vld [vmem:[%s37 + $0x18] sm:$0xff]
  %v581 = vld [vmem:[%s39] sm:$0x1]
  %v583 = vperm.slane %v581, 0
  %v586 = vsel %vm248, %v571, 0
  %v589 = vsel %vm248, %v572, 0
  %v592 = vsel %vm248, %v573, 0
  %v595 = vsel %vm248, %v574, 0
  %v598 = vsel %vm248, %v575, 0
  %v601 = vsel %vm248, %v576, 0
  %603 = vmatpush.msra.mxu0 0.0
  %604 = vmatpush.msra.mxu0 0.0
  %605 = vmatpush.msra.mxu0 0.0
  %606 = vmatpush.msra.mxu0 0.0
  %607 = vmatpush.msra.mxu0 0.0
  %608 = vmatpush.msra.mxu0 0.0
  %609 = vmatpush.msra.mxu0 0.0
  %610 = vmatpush.msra.mxu0 0.0
  %611 = vmatpush.msra.mxu0 0.0
  %612 = vmatpush.msra.mxu0 0.0
  %613 = vmatpush.msra.mxu0 0.0
  %614 = vmatpush.msra.mxu0 0.0
  %615 = vmatpush.msra.mxu0 %v580
  %616 = vmatpush.msra.mxu0 %v579
  %617 = vmatpush.msra.mxu0 %v578
  %618 = vmatpush.msra.mxu0 %v577
  %619 = vmatmul.f32.gmra.mxu0 %v586
  %v620 = vpop.f32.mrf.mxu0
  %v621 = vadd.f32 %v583, %v620
  %622 = vmatmul.f32.gmra.mxu0 %v589
  %v623 = vpop.f32.mrf.mxu0
  %v624 = vadd.f32 %v583, %v623
  %625 = vmatmul.f32.gmra.mxu0 %v592
  %v626 = vpop.f32.mrf.mxu0
  %v627 = vadd.f32 %v583, %v626
  %628 = vmatmul.f32.gmra.mxu0 %v595
  %v629 = vpop.f32.mrf.mxu0
  %v630 = vadd.f32 %v583, %v629
  %631 = vmatmul.f32.gmra.mxu0 %v598
  %v632 = vpop.f32.mrf.mxu0
  %v633 = vadd.f32 %v583, %v632
  %634 = vmatmul.f32.gmra.mxu0 %v601
  %v635 = vpop.f32.mrf.mxu0
  %v636 = vadd.f32 %v583, %v635
  %637 = vdwg.mxu0
  %vm638 = vcmp.ge.f32.partialorder %v621, 0.0
  %vm639 = vcmp.ge.f32.partialorder %v624, 0.0
  %vm640 = vcmp.ge.f32.partialorder %v627, 0.0
  %vm641 = vcmp.ge.f32.partialorder %v630, 0.0
  %vm642 = vcmp.ge.f32.partialorder %v633, 0.0
  %vm643 = vcmp.ge.f32.partialorder %v636, 0.0
  %v644 = vmul.f32 %v621, 0.01
  %v645 = vmul.f32 %v624, 0.01
  %v646 = vmul.f32 %v627, 0.01
  %v647 = vmul.f32 %v630, 0.01
  %v648 = vmul.f32 %v633, 0.01
  %v649 = vmul.f32 %v636, 0.01
  %v650 = vsel %vm638, %v621, %v644
  %v651 = vsel %vm639, %v624, %v645
  %v652 = vsel %vm640, %v627, %v646
  %v653 = vsel %vm641, %v630, %v647
  %v654 = vsel %vm642, %v633, %v648
  %v655 = vsel %vm643, %v636, %v649
  %v656 = vpack.c.bf16 %v490, %v487
  %v657 = vpack.c.bf16 %v496, %v493
  %v659 = vsel %vm248, %v425, 0
  %v662 = vsel %vm248, %v426, 0
  %v665 = vsel %vm248, %v427, 0
  %667 = vmatpush.bf16.msra.mxu0 0
  %668 = vmatpush.bf16.msra.mxu0 0
  %669 = vmatpush.bf16.msra.mxu0 0
  %670 = vmatpush.bf16.msra.mxu0 0
  %671 = vmatpush.bf16.msra.mxu0 0
  %672 = vmatpush.bf16.msra.mxu0 0
  %673 = vmatpush.bf16.msra.mxu0 %v657
  %674 = vmatpush.bf16.msra.mxu0 %v656
  %675 = vmatmul.bf16.gmra.mxu0 %v659
  %v676 = vpop.f32.mrf.mxu0
  %v677 = vadd.f32 %v650, %v676
  %v678 = vpop.f32.mrf.mxu0
  %v679 = vadd.f32 %v651, %v678
  %680 = vmatmul.bf16.gmra.mxu0 %v662
  %v681 = vpop.f32.mrf.mxu0
  %v682 = vadd.f32 %v652, %v681
  %v683 = vpop.f32.mrf.mxu0
  %v684 = vadd.f32 %v653, %v683
  %685 = vmatmul.bf16.gmra.mxu0 %v665
  %v686 = vpop.f32.mrf.mxu0
  %v687 = vadd.f32 %v654, %v686
  %v688 = vpop.f32.mrf.mxu0
  %v689 = vadd.f32 %v655, %v688
  %690 = vdwg.mxu0
  %v691 = vld [vmem:[%s41] sm:$0xff]
  %v692 = vld [vmem:[%s41 + $0x8] sm:$0xff]
  %v693 = vld [vmem:[%s41 + $0x10] sm:$0xff]
  %v694 = vld [vmem:[%s41 + $0x18] sm:$0xff]
  %v695 = vld [vmem:[%s43] sm:$0x1]
  %v697 = vperm.slane %v695, 0
  %v700 = vsel %vm248, %v677, 0
  %v703 = vsel %vm248, %v679, 0
  %v706 = vsel %vm248, %v682, 0
  %v709 = vsel %vm248, %v684, 0
  %v712 = vsel %vm248, %v687, 0
  %v715 = vsel %vm248, %v689, 0
  %717 = vmatpush.msra.mxu0 0.0
  %718 = vmatpush.msra.mxu0 0.0
  %719 = vmatpush.msra.mxu0 0.0
  %720 = vmatpush.msra.mxu0 0.0
  %721 = vmatpush.msra.mxu0 0.0
  %722 = vmatpush.msra.mxu0 0.0
  %723 = vmatpush.msra.mxu0 0.0
  %724 = vmatpush.msra.mxu0 0.0
  %725 = vmatpush.msra.mxu0 0.0
  %726 = vmatpush.msra.mxu0 0.0
  %727 = vmatpush.msra.mxu0 0.0
  %728 = vmatpush.msra.mxu0 0.0
  %729 = vmatpush.msra.mxu0 %v694
  %730 = vmatpush.msra.mxu0 %v693
  %731 = vmatpush.msra.mxu0 %v692
  %732 = vmatpush.msra.mxu0 %v691
  %733 = vmatmul.f32.gmra.mxu0 %v700
  %v734 = vpop.f32.mrf.mxu0
  %v735 = vadd.f32 %v697, %v734
  %736 = vmatmul.f32.gmra.mxu0 %v703
  %v737 = vpop.f32.mrf.mxu0
  %v738 = vadd.f32 %v697, %v737
  %739 = vmatmul.f32.gmra.mxu0 %v706
  %v740 = vpop.f32.mrf.mxu0
  %v741 = vadd.f32 %v697, %v740
  %742 = vmatmul.f32.gmra.mxu0 %v709
  %v743 = vpop.f32.mrf.mxu0
  %v744 = vadd.f32 %v697, %v743
  %745 = vmatmul.f32.gmra.mxu0 %v712
  %v746 = vpop.f32.mrf.mxu0
  %v747 = vadd.f32 %v697, %v746
  %748 = vmatmul.f32.gmra.mxu0 %v715
  %v749 = vpop.f32.mrf.mxu0
  %v750 = vadd.f32 %v697, %v749
  %751 = vdwg.mxu0
  %vm752 = vcmp.ge.f32.partialorder %v735, 0.0
  %vm753 = vcmp.ge.f32.partialorder %v738, 0.0
  %vm754 = vcmp.ge.f32.partialorder %v741, 0.0
  %vm755 = vcmp.ge.f32.partialorder %v744, 0.0
  %vm756 = vcmp.ge.f32.partialorder %v747, 0.0
  %vm757 = vcmp.ge.f32.partialorder %v750, 0.0
  %v758 = vmul.f32 %v735, 0.01
  %v759 = vmul.f32 %v738, 0.01
  %v760 = vmul.f32 %v741, 0.01
  %v761 = vmul.f32 %v744, 0.01
  %v762 = vmul.f32 %v747, 0.01
  %v763 = vmul.f32 %v750, 0.01
  %v764 = vsel %vm752, %v735, %v758
  %v765 = vsel %vm753, %v738, %v759
  %v766 = vsel %vm754, %v741, %v760
  %v767 = vsel %vm755, %v744, %v761
  %v768 = vsel %vm756, %v747, %v762
  %v769 = vsel %vm757, %v750, %v763
  %v770 = vld [vmem:[%s45] sm:$0xff]
  %v771 = vld [vmem:[%s45 + $0x8] sm:$0xff]
  %v772 = vld [vmem:[%s45 + $0x10] sm:$0xff]
  %v773 = vld [vmem:[%s45 + $0x18] sm:$0xff]
  %v774 = vld [vmem:[%s47] sm:$0x1]
  %v776 = vperm.slane %v774, 0
  %v779 = vsel %vm248, %v764, 0
  %v782 = vsel %vm248, %v765, 0
  %v785 = vsel %vm248, %v766, 0
  %v788 = vsel %vm248, %v767, 0
  %v791 = vsel %vm248, %v768, 0
  %v794 = vsel %vm248, %v769, 0
  %796 = vmatpush.msra.mxu0 0.0
  %797 = vmatpush.msra.mxu0 0.0
  %798 = vmatpush.msra.mxu0 0.0
  %799 = vmatpush.msra.mxu0 0.0
  %800 = vmatpush.msra.mxu0 0.0
  %801 = vmatpush.msra.mxu0 0.0
  %802 = vmatpush.msra.mxu0 0.0
  %803 = vmatpush.msra.mxu0 0.0
  %804 = vmatpush.msra.mxu0 0.0
  %805 = vmatpush.msra.mxu0 0.0
  %806 = vmatpush.msra.mxu0 0.0
  %807 = vmatpush.msra.mxu0 0.0
  %808 = vmatpush.msra.mxu0 %v773
  %809 = vmatpush.msra.mxu0 %v772
  %810 = vmatpush.msra.mxu0 %v771
  %811 = vmatpush.msra.mxu0 %v770
  %812 = vmatmul.f32.gmra.mxu0 %v779
  %v813 = vpop.f32.mrf.mxu0
  %v814 = vadd.f32 %v776, %v813
  %815 = vmatmul.f32.gmra.mxu0 %v782
  %v816 = vpop.f32.mrf.mxu0
  %v817 = vadd.f32 %v776, %v816
  %818 = vmatmul.f32.gmra.mxu0 %v785
  %v819 = vpop.f32.mrf.mxu0
  %v820 = vadd.f32 %v776, %v819
  %821 = vmatmul.f32.gmra.mxu0 %v788
  %v822 = vpop.f32.mrf.mxu0
  %v823 = vadd.f32 %v776, %v822
  %824 = vmatmul.f32.gmra.mxu0 %v791
  %v825 = vpop.f32.mrf.mxu0
  %v826 = vadd.f32 %v776, %v825
  %827 = vmatmul.f32.gmra.mxu0 %v794
  %v828 = vpop.f32.mrf.mxu0
  %v829 = vadd.f32 %v776, %v828
  %830 = vdwg.mxu0
  %v831 = vpack.c.bf16 %v817, %v814
  %v832 = vpack.c.bf16 %v823, %v820
  %v833 = vpack.c.bf16 %v829, %v826
  %vm834 = vcmask 392192
  %v836 = vsel %vm834, %v443, 0
  %v839 = vsel %vm834, %v444, 0
  %841 = vmatpush.bf16.msra.mxu0 0
  %842 = vmatpush.bf16.msra.mxu0 0
  %843 = vmatpush.bf16.msra.mxu0 0
  %844 = vmatpush.bf16.msra.mxu0 0
  %845 = vmatpush.bf16.msra.mxu0 0
  %846 = vmatpush.bf16.msra.mxu0 %v833
  %847 = vmatpush.bf16.msra.mxu0 %v832
  %848 = vmatpush.bf16.msra.mxu0 %v831
  %849 = vmatmul.bf16.gmra.mxu0 %v836
  %v850 = vpop.f32.mrf.mxu0
  %v851 = vadd.f32 0.0, %v850
  %v852 = vpop.f32.mrf.mxu0
  %v853 = vadd.f32 0.0, %v852
  %854 = vmatmul.bf16.gmra.mxu0 %v839
  %v855 = vpop.f32.mrf.mxu0
  %v856 = vadd.f32 0.0, %v855
  %v857 = vpop.f32.mrf.mxu0
  %v858 = vadd.f32 0.0, %v857
  %859 = vdwg.mxu0
  %864 = vrot.lane.b32.xlu0 %v487, 96
  %v865 = vpop.permute.xlu0 %864
  %866 = vrot.lane.b32.xlu0 %v490, 96
  %v867 = vpop.permute.xlu0 %866
  %868 = vrot.lane.b32.xlu0 %v493, 96
  %v869 = vpop.permute.xlu0 %868
  %870 = vrot.lane.b32.xlu0 %v496, 96
  %v871 = vpop.permute.xlu0 %870
  %v872 = vsel %vm248, %v865, 0
  %v874 = vsel %vm248, %v867, 0
  %v876 = vsel %vm248, %v869, 0
  %v878 = vsel %vm248, %v871, 0
  %880 = vmatpush.xpose.msra.mxu0 0.0
  %881 = vmatpush.xpose.msra.mxu0 0.0
  %882 = vmatpush.xpose.msra.mxu0 0.0
  %883 = vmatpush.xpose.msra.mxu0 0.0
  %884 = vmatpush.xpose.msra.mxu0 0.0
  %885 = vmatpush.xpose.msra.mxu0 0.0
  %886 = vmatpush.xpose.msra.mxu0 0.0
  %887 = vmatpush.xpose.msra.mxu0 0.0
  %888 = vmatpush.xpose.msra.mxu0 0.0
  %889 = vmatpush.xpose.msra.mxu0 0.0
  %890 = vmatpush.xpose.msra.mxu0 0.0
  %891 = vmatpush.xpose.msra.mxu0 0.0
  %892 = vmatpush.xpose.msra.mxu0 %v878
  %893 = vmatpush.xpose.msra.mxu0 %v876
  %894 = vmatpush.xpose.msra.mxu0 %v874
  %895 = vmatpush.xpose.msra.mxu0 %v872
  %896 = vmatmul.f32.gmra.mxu0 %v872
  %v897 = vpop.f32.mrf.mxu0
  %v898 = vadd.f32 0.0, %v897
  %899 = vmatmul.f32.gmra.mxu0 %v874
  %v900 = vpop.f32.mrf.mxu0
  %v901 = vadd.f32 0.0, %v900
  %902 = vmatmul.f32.gmra.mxu0 %v876
  %v903 = vpop.f32.mrf.mxu0
  %v904 = vadd.f32 0.0, %v903
  %905 = vmatmul.f32.gmra.mxu0 %v878
  %v906 = vpop.f32.mrf.mxu0
  %v907 = vadd.f32 0.0, %v906
  %908 = vdwg.mxu0
  %v909 = vmul.f32 %v898, 0.17677669
  %v910 = vmul.f32 %v901, 0.17677669
  %v911 = vmul.f32 %v904, 0.17677669
  %v912 = vmul.f32 %v907, 0.17677669
  %v913 = vsel %vm449, %v909, -1e+30
  %v914 = vsel %vm450, %v910, -1e+30
  %v915 = vsel %vm451, %v911, -1e+30
  %v916 = vsel %vm452, %v912, -1e+30
  %v917 = vsel %vm248, %v913, -inf
  %918 = vmax.xlane.f32.xlu0 %v917
  %v919 = vpop.xlane.xlu0 %918
  %v920 = vsel %vm248, %v914, -inf
  %921 = vmax.xlane.f32.xlu0 %v920
  %v922 = vpop.xlane.xlu0 %921
  %v923 = vsel %vm248, %v915, -inf
  %924 = vmax.xlane.f32.xlu0 %v923
  %v925 = vpop.xlane.xlu0 %924
  %v926 = vsel %vm248, %v916, -inf
  %927 = vmax.xlane.f32.xlu0 %v926
  %v928 = vpop.xlane.xlu0 %927
  %v929 = vsub.f32 %v913, %v919
  %v930 = vsub.f32 %v914, %v922
  %v931 = vsub.f32 %v915, %v925
  %v932 = vsub.f32 %v916, %v928
  %v933 = vmul.f32 %v929, 1.442695
  %v934 = vpow.pop %v933
  %v935 = vmul.f32 %v930, 1.442695
  %v936 = vpow.pop %v935
  %v937 = vmul.f32 %v931, 1.442695
  %v938 = vpow.pop %v937
  %v939 = vmul.f32 %v932, 1.442695
  %v940 = vpow.pop %v939
  %v941 = vmul.f32 %v445, %v934
  %v942 = vmul.f32 %v446, %v936
  %v943 = vmul.f32 %v447, %v938
  %v944 = vmul.f32 %v448, %v940
  %v945 = vsel %vm248, %v941, 0.0
  %946 = vadd.xlane.f32.xlu0 %v945
  %v947 = vpop.xlane.xlu0 %946
  %v948 = vsel %vm248, %v942, 0.0
  %949 = vadd.xlane.f32.xlu0 %v948
  %v950 = vpop.xlane.xlu0 %949
  %v951 = vsel %vm248, %v943, 0.0
  %952 = vadd.xlane.f32.xlu0 %v951
  %v953 = vpop.xlane.xlu0 %952
  %v954 = vsel %vm248, %v944, 0.0
  %955 = vadd.xlane.f32.xlu0 %v954
  %v956 = vpop.xlane.xlu0 %955
  %957 = vrot.lane.b32.xlu0 %v487, 64
  %v958 = vpop.permute.xlu0 %957
  %959 = vrot.lane.b32.xlu0 %v490, 64
  %v960 = vpop.permute.xlu0 %959
  %961 = vrot.lane.b32.xlu0 %v493, 64
  %v962 = vpop.permute.xlu0 %961
  %963 = vrot.lane.b32.xlu0 %v496, 64
  %v964 = vpop.permute.xlu0 %963
  %v970 = vsel %vm248, %v941, 0
  %v973 = vsel %vm248, %v942, 0
  %v976 = vsel %vm248, %v943, 0
  %v979 = vsel %vm248, %v944, 0
  %981 = vmatpush.msra.mxu0 0.0
  %982 = vmatpush.msra.mxu0 0.0
  %983 = vmatpush.msra.mxu0 0.0
  %984 = vmatpush.msra.mxu0 0.0
  %985 = vmatpush.msra.mxu0 0.0
  %986 = vmatpush.msra.mxu0 0.0
  %987 = vmatpush.msra.mxu0 0.0
  %988 = vmatpush.msra.mxu0 0.0
  %989 = vmatpush.msra.mxu0 0.0
  %990 = vmatpush.msra.mxu0 0.0
  %991 = vmatpush.msra.mxu0 0.0
  %992 = vmatpush.msra.mxu0 0.0
  %993 = vmatpush.msra.mxu0 %v964
  %994 = vmatpush.msra.mxu0 %v962
  %995 = vmatpush.msra.mxu0 %v960
  %996 = vmatpush.msra.mxu0 %v958
  %997 = vmatmul.f32.gmra.mxu0 %v970
  %v998 = vpop.f32.mrf.mxu0
  %v999 = vadd.f32 0.0, %v998
  %1000 = vmatmul.f32.gmra.mxu0 %v973
  %v1001 = vpop.f32.mrf.mxu0
  %v1002 = vadd.f32 0.0, %v1001
  %1003 = vmatmul.f32.gmra.mxu0 %v976
  %v1004 = vpop.f32.mrf.mxu0
  %v1005 = vadd.f32 0.0, %v1004
  %1006 = vmatmul.f32.gmra.mxu0 %v979
  %v1007 = vpop.f32.mrf.mxu0
  %v1008 = vadd.f32 0.0, %v1007
  %1009 = vdwg.mxu0
  %vm1010 = vcmp.gt.f32.partialorder %v947, 0.0
  %vm1011 = vcmp.gt.f32.partialorder %v950, 0.0
  %vm1012 = vcmp.gt.f32.partialorder %v953, 0.0
  %vm1013 = vcmp.gt.f32.partialorder %v956, 0.0
  %v1014 = vsel %vm1010, %v947, 1.0
  %v1015 = vsel %vm1011, %v950, 1.0
  %v1016 = vsel %vm1012, %v953, 1.0
  %v1017 = vsel %vm1013, %v956, 1.0
  %v1018 = vrcp.pop %v1014
  %v1019 = vrcp.pop %v1015
  %v1020 = vrcp.pop %v1016
  %v1021 = vrcp.pop %v1017
  %v1022 = vmul.f32 %v999, %v1018
  %v1023 = vmul.f32 %v1002, %v1019
  %v1024 = vmul.f32 %v1005, %v1020
  %v1025 = vmul.f32 %v1008, %v1021
  %v1026 = vsel %vm1010, 1, 0
  %v1027 = vsel %vm1011, 1, 0
  %v1028 = vsel %vm1012, 1, 0
  %v1029 = vsel %vm1013, 1, 0
  %vm1030 = vcmp.eq.s32.totalorder %v1026, 1
  %vm1031 = vcmp.eq.s32.totalorder %v1027, 1
  %vm1032 = vcmp.eq.s32.totalorder %v1028, 1
  %vm1033 = vcmp.eq.s32.totalorder %v1029, 1
  %v1034 = vsel %vm1030, %v1022, 0.0
  %v1035 = vsel %vm1031, %v1023, 0.0
  %v1036 = vsel %vm1032, %v1024, 0.0
  %v1037 = vsel %vm1033, %v1025, 0.0
  %v1038 = vadd.f32 %v294, %v851
  %v1039 = vadd.f32 %v295, %v853
  %v1040 = vadd.f32 %v296, %v856
  %v1041 = vadd.f32 %v297, %v858
  %v1042 = vadd.f32 %v1038, %v1034
  %v1043 = vadd.f32 %v1039, %v1035
  %v1044 = vadd.f32 %v1040, %v1036
  %v1045 = vadd.f32 %v1041, %v1037
  %v1046 = vsel %vm248, %v1042, 0.0
  %1047 = vadd.xlane.f32.xlu0 %v1046
  %v1048 = vpop.xlane.xlu0 %1047
  %v1049 = vsel %vm248, %v1043, 0.0
  %1050 = vadd.xlane.f32.xlu0 %v1049
  %v1051 = vpop.xlane.xlu0 %1050
  %v1052 = vsel %vm248, %v1044, 0.0
  %1053 = vadd.xlane.f32.xlu0 %v1052
  %v1054 = vpop.xlane.xlu0 %1053
  %v1055 = vsel %vm248, %v1045, 0.0
  %1056 = vadd.xlane.f32.xlu0 %v1055
  %v1057 = vpop.xlane.xlu0 %1056
  %v1058 = vrcp.pop 32.0
  %v1059 = vmul.f32 32.0, %v1058
  %v1060 = vsub.f32 1.0, %v1059
  %v1061 = vmul.f32 %v1058, %v1060
  %v1062 = vadd.f32 %v1058, %v1061
  %vm1063 = vweird.f32 %v1058
  %v1064 = vsel %vm1063, %v1058, %v1062
  %v1065 = vmul.f32 %v1048, %v1064
  %v1066 = vmul.f32 %v1051, %v1064
  %v1067 = vmul.f32 %v1054, %v1064
  %v1068 = vmul.f32 %v1057, %v1064
  %v1069 = vsub.f32 %v1042, %v1065
  %v1070 = vsub.f32 %v1043, %v1066
  %v1071 = vsub.f32 %v1044, %v1067
  %v1072 = vsub.f32 %v1045, %v1068
  %v1073 = vmul.f32 %v1069, %v1069
  %v1074 = vmul.f32 %v1070, %v1070
  %v1075 = vmul.f32 %v1071, %v1071
  %v1076 = vmul.f32 %v1072, %v1072
  %v1077 = vsel %vm248, %v1073, 0.0
  %1078 = vadd.xlane.f32.xlu0 %v1077
  %v1079 = vpop.xlane.xlu0 %1078
  %v1080 = vsel %vm248, %v1074, 0.0
  %1081 = vadd.xlane.f32.xlu0 %v1080
  %v1082 = vpop.xlane.xlu0 %1081
  %v1083 = vsel %vm248, %v1075, 0.0
  %1084 = vadd.xlane.f32.xlu0 %v1083
  %v1085 = vpop.xlane.xlu0 %1084
  %v1086 = vsel %vm248, %v1076, 0.0
  %1087 = vadd.xlane.f32.xlu0 %v1086
  %v1088 = vpop.xlane.xlu0 %1087
  %v1089 = vmul.f32 %v1079, %v1064
  %v1090 = vmul.f32 %v1082, %v1064
  %v1091 = vmul.f32 %v1085, %v1064
  %v1092 = vmul.f32 %v1088, %v1064
  %v1093 = vadd.f32 %v1089, 1e-05
  %v1094 = vadd.f32 %v1090, 1e-05
  %v1095 = vadd.f32 %v1091, 1e-05
  %v1096 = vadd.f32 %v1092, 1e-05
  %v1097 = vrsqrt.pop %v1093
  %v1098 = vmul.f32 %v1097, %v1093
  %v1099 = vmul.f32 %v1098, %v1097
  %v1100 = vmul.f32 0.5, %v1099
  %v1101 = vsub.f32 1.5, %v1100
  %v1102 = vmul.f32 %v1097, %v1101
  %vm1103 = vweird.f32 %v1093
  %vm1104 = vweird.f32 %v1097
  %vm1105 = vmor %vm1103, %vm1104
  %v1106 = vsel %vm1105, %v1097, %v1102
  %v1107 = vrsqrt.pop %v1094
  %v1108 = vmul.f32 %v1107, %v1094
  %v1109 = vmul.f32 %v1108, %v1107
  %v1110 = vmul.f32 0.5, %v1109
  %v1111 = vsub.f32 1.5, %v1110
  %v1112 = vmul.f32 %v1107, %v1111
  %vm1113 = vweird.f32 %v1094
  %vm1114 = vweird.f32 %v1107
  %vm1115 = vmor %vm1113, %vm1114
  %v1116 = vsel %vm1115, %v1107, %v1112
  %v1117 = vrsqrt.pop %v1095
  %v1118 = vmul.f32 %v1117, %v1095
  %v1119 = vmul.f32 %v1118, %v1117
  %v1120 = vmul.f32 0.5, %v1119
  %v1121 = vsub.f32 1.5, %v1120
  %v1122 = vmul.f32 %v1117, %v1121
  %vm1123 = vweird.f32 %v1095
  %vm1124 = vweird.f32 %v1117
  %vm1125 = vmor %vm1123, %vm1124
  %v1126 = vsel %vm1125, %v1117, %v1122
  %v1127 = vrsqrt.pop %v1096
  %v1128 = vmul.f32 %v1127, %v1096
  %v1129 = vmul.f32 %v1128, %v1127
  %v1130 = vmul.f32 0.5, %v1129
  %v1131 = vsub.f32 1.5, %v1130
  %v1132 = vmul.f32 %v1127, %v1131
  %vm1133 = vweird.f32 %v1096
  %vm1134 = vweird.f32 %v1127
  %vm1135 = vmor %vm1133, %vm1134
  %v1136 = vsel %vm1135, %v1127, %v1132
  %v1137 = vmul.f32 %v1069, %v1106
  %v1138 = vmul.f32 %v1070, %v1116
  %v1139 = vmul.f32 %v1071, %v1126
  %v1140 = vmul.f32 %v1072, %v1136
  %v1141 = vld [vmem:[%s49] sm:$0x1]
  %v1143 = vperm.slane %v1141, 0
  %v1145 = vmul.f32 %v1137, %v1143
  %v1146 = vmul.f32 %v1138, %v1143
  %v1147 = vmul.f32 %v1139, %v1143
  %v1148 = vmul.f32 %v1140, %v1143
  %v1149 = vld [vmem:[%s51] sm:$0x1]
  %v1151 = vperm.slane %v1149, 0
  %v1153 = vadd.f32 %v1145, %v1151
  %v1154 = vadd.f32 %v1146, %v1151
  %v1155 = vadd.f32 %v1147, %v1151
  %v1156 = vadd.f32 %v1148, %v1151
  %s1157 = scalar_lea.vmem %s31, 32
  %v1158 = vld [vmem:[%s1157] sm:$0xff]
  %v1159 = vld [vmem:[%s1157 + $0x8] sm:$0xff]
  %v1160 = vld [vmem:[%s1157 + $0x10] sm:$0xff]
  %v1161 = vld [vmem:[%s1157 + $0x18] sm:$0xff]
  %v1163 = vsel %vm248, %v1153, 0
  %v1166 = vsel %vm248, %v1154, 0
  %v1169 = vsel %vm248, %v1155, 0
  %v1172 = vsel %vm248, %v1156, 0
  %1174 = vmatpush.msra.mxu0 0.0
  %1175 = vmatpush.msra.mxu0 0.0
  %1176 = vmatpush.msra.mxu0 0.0
  %1177 = vmatpush.msra.mxu0 0.0
  %1178 = vmatpush.msra.mxu0 0.0
  %1179 = vmatpush.msra.mxu0 0.0
  %1180 = vmatpush.msra.mxu0 0.0
  %1181 = vmatpush.msra.mxu0 0.0
  %1182 = vmatpush.msra.mxu0 0.0
  %1183 = vmatpush.msra.mxu0 0.0
  %1184 = vmatpush.msra.mxu0 0.0
  %1185 = vmatpush.msra.mxu0 0.0
  %1186 = vmatpush.msra.mxu0 %v1161
  %1187 = vmatpush.msra.mxu0 %v1160
  %1188 = vmatpush.msra.mxu0 %v1159
  %1189 = vmatpush.msra.mxu0 %v1158
  %1190 = vmatmul.f32.gmra.mxu0 %v1163
  %v1191 = vpop.f32.mrf.mxu0
  %v1192 = vadd.f32 0.0, %v1191
  %1193 = vmatmul.f32.gmra.mxu0 %v1166
  %v1194 = vpop.f32.mrf.mxu0
  %v1195 = vadd.f32 0.0, %v1194
  %1196 = vmatmul.f32.gmra.mxu0 %v1169
  %v1197 = vpop.f32.mrf.mxu0
  %v1198 = vadd.f32 0.0, %v1197
  %1199 = vmatmul.f32.gmra.mxu0 %v1172
  %v1200 = vpop.f32.mrf.mxu0
  %v1201 = vadd.f32 0.0, %v1200
  %1202 = vdwg.mxu0
  %s1203 = scalar_lea.vmem %s33, 32
  %v1204 = vld [vmem:[%s1203] sm:$0xff]
  %v1205 = vld [vmem:[%s1203 + $0x8] sm:$0xff]
  %v1206 = vld [vmem:[%s1203 + $0x10] sm:$0xff]
  %v1207 = vld [vmem:[%s1203 + $0x18] sm:$0xff]
  %s1208 = scalar_lea.vmem %s35, 1
  %v1209 = vld [vmem:[%s1208] sm:$0x1]
  %v1211 = vperm.slane %v1209, 0
  %1213 = vmatpush.msra.mxu0 0.0
  %1214 = vmatpush.msra.mxu0 0.0
  %1215 = vmatpush.msra.mxu0 0.0
  %1216 = vmatpush.msra.mxu0 0.0
  %1217 = vmatpush.msra.mxu0 0.0
  %1218 = vmatpush.msra.mxu0 0.0
  %1219 = vmatpush.msra.mxu0 0.0
  %1220 = vmatpush.msra.mxu0 0.0
  %1221 = vmatpush.msra.mxu0 0.0
  %1222 = vmatpush.msra.mxu0 0.0
  %1223 = vmatpush.msra.mxu0 0.0
  %1224 = vmatpush.msra.mxu0 0.0
  %1225 = vmatpush.msra.mxu0 %v1207
  %1226 = vmatpush.msra.mxu0 %v1206
  %1227 = vmatpush.msra.mxu0 %v1205
  %1228 = vmatpush.msra.mxu0 %v1204
  %1229 = vmatmul.f32.gmra.mxu0 %v507
  %v1230 = vpop.f32.mrf.mxu0
  %v1231 = vadd.f32 %v1211, %v1230
  %1232 = vmatmul.f32.gmra.mxu0 %v510
  %v1233 = vpop.f32.mrf.mxu0
  %v1234 = vadd.f32 %v1211, %v1233
  %1235 = vmatmul.f32.gmra.mxu0 %v513
  %v1236 = vpop.f32.mrf.mxu0
  %v1237 = vadd.f32 %v1211, %v1236
  %1238 = vmatmul.f32.gmra.mxu0 %v516
  %v1239 = vpop.f32.mrf.mxu0
  %v1240 = vadd.f32 %v1211, %v1239
  %1241 = vmatmul.f32.gmra.mxu0 %v519
  %v1242 = vpop.f32.mrf.mxu0
  %v1243 = vadd.f32 %v1211, %v1242
  %1244 = vmatmul.f32.gmra.mxu0 %v522
  %v1245 = vpop.f32.mrf.mxu0
  %v1246 = vadd.f32 %v1211, %v1245
  %1247 = vdwg.mxu0
  %vm1248 = vcmp.ge.f32.partialorder %v1231, 0.0
  %vm1249 = vcmp.ge.f32.partialorder %v1234, 0.0
  %vm1250 = vcmp.ge.f32.partialorder %v1237, 0.0
  %vm1251 = vcmp.ge.f32.partialorder %v1240, 0.0
  %vm1252 = vcmp.ge.f32.partialorder %v1243, 0.0
  %vm1253 = vcmp.ge.f32.partialorder %v1246, 0.0
  %v1254 = vmul.f32 %v1231, 0.01
  %v1255 = vmul.f32 %v1234, 0.01
  %v1256 = vmul.f32 %v1237, 0.01
  %v1257 = vmul.f32 %v1240, 0.01
  %v1258 = vmul.f32 %v1243, 0.01
  %v1259 = vmul.f32 %v1246, 0.01
  %v1260 = vsel %vm1248, %v1231, %v1254
  %v1261 = vsel %vm1249, %v1234, %v1255
  %v1262 = vsel %vm1250, %v1237, %v1256
  %v1263 = vsel %vm1251, %v1240, %v1257
  %v1264 = vsel %vm1252, %v1243, %v1258
  %v1265 = vsel %vm1253, %v1246, %v1259
  %s1266 = scalar_lea.vmem %s37, 32
  %v1267 = vld [vmem:[%s1266] sm:$0xff]
  %v1268 = vld [vmem:[%s1266 + $0x8] sm:$0xff]
  %v1269 = vld [vmem:[%s1266 + $0x10] sm:$0xff]
  %v1270 = vld [vmem:[%s1266 + $0x18] sm:$0xff]
  %s1271 = scalar_lea.vmem %s39, 1
  %v1272 = vld [vmem:[%s1271] sm:$0x1]
  %v1274 = vperm.slane %v1272, 0
  %v1277 = vsel %vm248, %v1260, 0
  %v1280 = vsel %vm248, %v1261, 0
  %v1283 = vsel %vm248, %v1262, 0
  %v1286 = vsel %vm248, %v1263, 0
  %v1289 = vsel %vm248, %v1264, 0
  %v1292 = vsel %vm248, %v1265, 0
  %1294 = vmatpush.msra.mxu0 0.0
  %1295 = vmatpush.msra.mxu0 0.0
  %1296 = vmatpush.msra.mxu0 0.0
  %1297 = vmatpush.msra.mxu0 0.0
  %1298 = vmatpush.msra.mxu0 0.0
  %1299 = vmatpush.msra.mxu0 0.0
  %1300 = vmatpush.msra.mxu0 0.0
  %1301 = vmatpush.msra.mxu0 0.0
  %1302 = vmatpush.msra.mxu0 0.0
  %1303 = vmatpush.msra.mxu0 0.0
  %1304 = vmatpush.msra.mxu0 0.0
  %1305 = vmatpush.msra.mxu0 0.0
  %1306 = vmatpush.msra.mxu0 %v1270
  %1307 = vmatpush.msra.mxu0 %v1269
  %1308 = vmatpush.msra.mxu0 %v1268
  %1309 = vmatpush.msra.mxu0 %v1267
  %1310 = vmatmul.f32.gmra.mxu0 %v1277
  %v1311 = vpop.f32.mrf.mxu0
  %v1312 = vadd.f32 %v1274, %v1311
  %1313 = vmatmul.f32.gmra.mxu0 %v1280
  %v1314 = vpop.f32.mrf.mxu0
  %v1315 = vadd.f32 %v1274, %v1314
  %1316 = vmatmul.f32.gmra.mxu0 %v1283
  %v1317 = vpop.f32.mrf.mxu0
  %v1318 = vadd.f32 %v1274, %v1317
  %1319 = vmatmul.f32.gmra.mxu0 %v1286
  %v1320 = vpop.f32.mrf.mxu0
  %v1321 = vadd.f32 %v1274, %v1320
  %1322 = vmatmul.f32.gmra.mxu0 %v1289
  %v1323 = vpop.f32.mrf.mxu0
  %v1324 = vadd.f32 %v1274, %v1323
  %1325 = vmatmul.f32.gmra.mxu0 %v1292
  %v1326 = vpop.f32.mrf.mxu0
  %v1327 = vadd.f32 %v1274, %v1326
  %1328 = vdwg.mxu0
  %vm1329 = vcmp.ge.f32.partialorder %v1312, 0.0
  %vm1330 = vcmp.ge.f32.partialorder %v1315, 0.0
  %vm1331 = vcmp.ge.f32.partialorder %v1318, 0.0
  %vm1332 = vcmp.ge.f32.partialorder %v1321, 0.0
  %vm1333 = vcmp.ge.f32.partialorder %v1324, 0.0
  %vm1334 = vcmp.ge.f32.partialorder %v1327, 0.0
  %v1335 = vmul.f32 %v1312, 0.01
  %v1336 = vmul.f32 %v1315, 0.01
  %v1337 = vmul.f32 %v1318, 0.01
  %v1338 = vmul.f32 %v1321, 0.01
  %v1339 = vmul.f32 %v1324, 0.01
  %v1340 = vmul.f32 %v1327, 0.01
  %v1341 = vsel %vm1329, %v1312, %v1335
  %v1342 = vsel %vm1330, %v1315, %v1336
  %v1343 = vsel %vm1331, %v1318, %v1337
  %v1344 = vsel %vm1332, %v1321, %v1338
  %v1345 = vsel %vm1333, %v1324, %v1339
  %v1346 = vsel %vm1334, %v1327, %v1340
  %v1347 = vpack.c.bf16 %v1195, %v1192
  %v1348 = vpack.c.bf16 %v1201, %v1198
  %1349 = vmatpush.bf16.msra.mxu0 0
  %1350 = vmatpush.bf16.msra.mxu0 0
  %1351 = vmatpush.bf16.msra.mxu0 0
  %1352 = vmatpush.bf16.msra.mxu0 0
  %1353 = vmatpush.bf16.msra.mxu0 0
  %1354 = vmatpush.bf16.msra.mxu0 0
  %1355 = vmatpush.bf16.msra.mxu0 %v1348
  %1356 = vmatpush.bf16.msra.mxu0 %v1347
  %1357 = vmatmul.bf16.gmra.mxu0 %v659
  %v1358 = vpop.f32.mrf.mxu0
  %v1359 = vadd.f32 %v1341, %v1358
  %v1360 = vpop.f32.mrf.mxu0
  %v1361 = vadd.f32 %v1342, %v1360
  %1362 = vmatmul.bf16.gmra.mxu0 %v662
  %v1363 = vpop.f32.mrf.mxu0
  %v1364 = vadd.f32 %v1343, %v1363
  %v1365 = vpop.f32.mrf.mxu0
  %v1366 = vadd.f32 %v1344, %v1365
  %1367 = vmatmul.bf16.gmra.mxu0 %v665
  %v1368 = vpop.f32.mrf.mxu0
  %v1369 = vadd.f32 %v1345, %v1368
  %v1370 = vpop.f32.mrf.mxu0
  %v1371 = vadd.f32 %v1346, %v1370
  %1372 = vdwg.mxu0
  %s1373 = scalar_lea.vmem %s41, 32
  %v1374 = vld [vmem:[%s1373] sm:$0xff]
  %v1375 = vld [vmem:[%s1373 + $0x8] sm:$0xff]
  %v1376 = vld [vmem:[%s1373 + $0x10] sm:$0xff]
  %v1377 = vld [vmem:[%s1373 + $0x18] sm:$0xff]
  %s1378 = scalar_lea.vmem %s43, 1
  %v1379 = vld [vmem:[%s1378] sm:$0x1]
  %v1381 = vperm.slane %v1379, 0
  %v1384 = vsel %vm248, %v1359, 0
  %v1387 = vsel %vm248, %v1361, 0
  %v1390 = vsel %vm248, %v1364, 0
  %v1393 = vsel %vm248, %v1366, 0
  %v1396 = vsel %vm248, %v1369, 0
  %v1399 = vsel %vm248, %v1371, 0
  %1401 = vmatpush.msra.mxu0 0.0
  %1402 = vmatpush.msra.mxu0 0.0
  %1403 = vmatpush.msra.mxu0 0.0
  %1404 = vmatpush.msra.mxu0 0.0
  %1405 = vmatpush.msra.mxu0 0.0
  %1406 = vmatpush.msra.mxu0 0.0
  %1407 = vmatpush.msra.mxu0 0.0
  %1408 = vmatpush.msra.mxu0 0.0
  %1409 = vmatpush.msra.mxu0 0.0
  %1410 = vmatpush.msra.mxu0 0.0
  %1411 = vmatpush.msra.mxu0 0.0
  %1412 = vmatpush.msra.mxu0 0.0
  %1413 = vmatpush.msra.mxu0 %v1377
  %1414 = vmatpush.msra.mxu0 %v1376
  %1415 = vmatpush.msra.mxu0 %v1375
  %1416 = vmatpush.msra.mxu0 %v1374
  %1417 = vmatmul.f32.gmra.mxu0 %v1384
  %v1418 = vpop.f32.mrf.mxu0
  %v1419 = vadd.f32 %v1381, %v1418
  %1420 = vmatmul.f32.gmra.mxu0 %v1387
  %v1421 = vpop.f32.mrf.mxu0
  %v1422 = vadd.f32 %v1381, %v1421
  %1423 = vmatmul.f32.gmra.mxu0 %v1390
  %v1424 = vpop.f32.mrf.mxu0
  %v1425 = vadd.f32 %v1381, %v1424
  %1426 = vmatmul.f32.gmra.mxu0 %v1393
  %v1427 = vpop.f32.mrf.mxu0
  %v1428 = vadd.f32 %v1381, %v1427
  %1429 = vmatmul.f32.gmra.mxu0 %v1396
  %v1430 = vpop.f32.mrf.mxu0
  %v1431 = vadd.f32 %v1381, %v1430
  %1432 = vmatmul.f32.gmra.mxu0 %v1399
  %v1433 = vpop.f32.mrf.mxu0
  %v1434 = vadd.f32 %v1381, %v1433
  %1435 = vdwg.mxu0
  %vm1436 = vcmp.ge.f32.partialorder %v1419, 0.0
  %vm1437 = vcmp.ge.f32.partialorder %v1422, 0.0
  %vm1438 = vcmp.ge.f32.partialorder %v1425, 0.0
  %vm1439 = vcmp.ge.f32.partialorder %v1428, 0.0
  %vm1440 = vcmp.ge.f32.partialorder %v1431, 0.0
  %vm1441 = vcmp.ge.f32.partialorder %v1434, 0.0
  %v1442 = vmul.f32 %v1419, 0.01
  %v1443 = vmul.f32 %v1422, 0.01
  %v1444 = vmul.f32 %v1425, 0.01
  %v1445 = vmul.f32 %v1428, 0.01
  %v1446 = vmul.f32 %v1431, 0.01
  %v1447 = vmul.f32 %v1434, 0.01
  %v1448 = vsel %vm1436, %v1419, %v1442
  %v1449 = vsel %vm1437, %v1422, %v1443
  %v1450 = vsel %vm1438, %v1425, %v1444
  %v1451 = vsel %vm1439, %v1428, %v1445
  %v1452 = vsel %vm1440, %v1431, %v1446
  %v1453 = vsel %vm1441, %v1434, %v1447
  %s1454 = scalar_lea.vmem %s45, 32
  %v1455 = vld [vmem:[%s1454] sm:$0xff]
  %v1456 = vld [vmem:[%s1454 + $0x8] sm:$0xff]
  %v1457 = vld [vmem:[%s1454 + $0x10] sm:$0xff]
  %v1458 = vld [vmem:[%s1454 + $0x18] sm:$0xff]
  %s1459 = scalar_lea.vmem %s47, 1
  %v1460 = vld [vmem:[%s1459] sm:$0x1]
  %v1462 = vperm.slane %v1460, 0
  %v1465 = vsel %vm248, %v1448, 0
  %v1468 = vsel %vm248, %v1449, 0
  %v1471 = vsel %vm248, %v1450, 0
  %v1474 = vsel %vm248, %v1451, 0
  %v1477 = vsel %vm248, %v1452, 0
  %v1480 = vsel %vm248, %v1453, 0
  %1482 = vmatpush.msra.mxu0 0.0
  %1483 = vmatpush.msra.mxu0 0.0
  %1484 = vmatpush.msra.mxu0 0.0
  %1485 = vmatpush.msra.mxu0 0.0
  %1486 = vmatpush.msra.mxu0 0.0
  %1487 = vmatpush.msra.mxu0 0.0
  %1488 = vmatpush.msra.mxu0 0.0
  %1489 = vmatpush.msra.mxu0 0.0
  %1490 = vmatpush.msra.mxu0 0.0
  %1491 = vmatpush.msra.mxu0 0.0
  %1492 = vmatpush.msra.mxu0 0.0
  %1493 = vmatpush.msra.mxu0 0.0
  %1494 = vmatpush.msra.mxu0 %v1458
  %1495 = vmatpush.msra.mxu0 %v1457
  %1496 = vmatpush.msra.mxu0 %v1456
  %1497 = vmatpush.msra.mxu0 %v1455
  %1498 = vmatmul.f32.gmra.mxu0 %v1465
  %v1499 = vpop.f32.mrf.mxu0
  %v1500 = vadd.f32 %v1462, %v1499
  %1501 = vmatmul.f32.gmra.mxu0 %v1468
  %v1502 = vpop.f32.mrf.mxu0
  %v1503 = vadd.f32 %v1462, %v1502
  %1504 = vmatmul.f32.gmra.mxu0 %v1471
  %v1505 = vpop.f32.mrf.mxu0
  %v1506 = vadd.f32 %v1462, %v1505
  %1507 = vmatmul.f32.gmra.mxu0 %v1474
  %v1508 = vpop.f32.mrf.mxu0
  %v1509 = vadd.f32 %v1462, %v1508
  %1510 = vmatmul.f32.gmra.mxu0 %v1477
  %v1511 = vpop.f32.mrf.mxu0
  %v1512 = vadd.f32 %v1462, %v1511
  %1513 = vmatmul.f32.gmra.mxu0 %v1480
  %v1514 = vpop.f32.mrf.mxu0
  %v1515 = vadd.f32 %v1462, %v1514
  %1516 = vdwg.mxu0
  %v1517 = vpack.c.bf16 %v1503, %v1500
  %v1518 = vpack.c.bf16 %v1509, %v1506
  %v1519 = vpack.c.bf16 %v1515, %v1512
  %1520 = vmatpush.bf16.msra.mxu0 0
  %1521 = vmatpush.bf16.msra.mxu0 0
  %1522 = vmatpush.bf16.msra.mxu0 0
  %1523 = vmatpush.bf16.msra.mxu0 0
  %1524 = vmatpush.bf16.msra.mxu0 0
  %1525 = vmatpush.bf16.msra.mxu0 %v1519
  %1526 = vmatpush.bf16.msra.mxu0 %v1518
  %1527 = vmatpush.bf16.msra.mxu0 %v1517
  %1528 = vmatmul.bf16.gmra.mxu0 %v836
  %v1529 = vpop.f32.mrf.mxu0
  %v1530 = vadd.f32 0.0, %v1529
  %v1531 = vpop.f32.mrf.mxu0
  %v1532 = vadd.f32 0.0, %v1531
  %1533 = vmatmul.bf16.gmra.mxu0 %v839
  %v1534 = vpop.f32.mrf.mxu0
  %v1535 = vadd.f32 0.0, %v1534
  %v1536 = vpop.f32.mrf.mxu0
  %v1537 = vadd.f32 0.0, %v1536
  %1538 = vdwg.mxu0
  %1543 = vrot.lane.b32.xlu0 %v1192, 96
  %v1544 = vpop.permute.xlu0 %1543
  %1545 = vrot.lane.b32.xlu0 %v1195, 96
  %v1546 = vpop.permute.xlu0 %1545
  %1547 = vrot.lane.b32.xlu0 %v1198, 96
  %v1548 = vpop.permute.xlu0 %1547
  %1549 = vrot.lane.b32.xlu0 %v1201, 96
  %v1550 = vpop.permute.xlu0 %1549
  %v1551 = vsel %vm248, %v1544, 0
  %v1553 = vsel %vm248, %v1546, 0
  %v1555 = vsel %vm248, %v1548, 0
  %v1557 = vsel %vm248, %v1550, 0
  %1559 = vmatpush.xpose.msra.mxu0 0.0
  %1560 = vmatpush.xpose.msra.mxu0 0.0
  %1561 = vmatpush.xpose.msra.mxu0 0.0
  %1562 = vmatpush.xpose.msra.mxu0 0.0
  %1563 = vmatpush.xpose.msra.mxu0 0.0
  %1564 = vmatpush.xpose.msra.mxu0 0.0
  %1565 = vmatpush.xpose.msra.mxu0 0.0
  %1566 = vmatpush.xpose.msra.mxu0 0.0
  %1567 = vmatpush.xpose.msra.mxu0 0.0
  %1568 = vmatpush.xpose.msra.mxu0 0.0
  %1569 = vmatpush.xpose.msra.mxu0 0.0
  %1570 = vmatpush.xpose.msra.mxu0 0.0
  %1571 = vmatpush.xpose.msra.mxu0 %v1557
  %1572 = vmatpush.xpose.msra.mxu0 %v1555
  %1573 = vmatpush.xpose.msra.mxu0 %v1553
  %1574 = vmatpush.xpose.msra.mxu0 %v1551
  %1575 = vmatmul.f32.gmra.mxu0 %v1551
  %v1576 = vpop.f32.mrf.mxu0
  %v1577 = vadd.f32 0.0, %v1576
  %1578 = vmatmul.f32.gmra.mxu0 %v1553
  %v1579 = vpop.f32.mrf.mxu0
  %v1580 = vadd.f32 0.0, %v1579
  %1581 = vmatmul.f32.gmra.mxu0 %v1555
  %v1582 = vpop.f32.mrf.mxu0
  %v1583 = vadd.f32 0.0, %v1582
  %1584 = vmatmul.f32.gmra.mxu0 %v1557
  %v1585 = vpop.f32.mrf.mxu0
  %v1586 = vadd.f32 0.0, %v1585
  %1587 = vdwg.mxu0
  %v1588 = vmul.f32 %v1577, 0.17677669
  %v1589 = vmul.f32 %v1580, 0.17677669
  %v1590 = vmul.f32 %v1583, 0.17677669
  %v1591 = vmul.f32 %v1586, 0.17677669
  %v1592 = vsel %vm449, %v1588, -1e+30
  %v1593 = vsel %vm450, %v1589, -1e+30
  %v1594 = vsel %vm451, %v1590, -1e+30
  %v1595 = vsel %vm452, %v1591, -1e+30
  %v1596 = vsel %vm248, %v1592, -inf
  %1597 = vmax.xlane.f32.xlu0 %v1596
  %v1598 = vpop.xlane.xlu0 %1597
  %v1599 = vsel %vm248, %v1593, -inf
  %1600 = vmax.xlane.f32.xlu0 %v1599
  %v1601 = vpop.xlane.xlu0 %1600
  %v1602 = vsel %vm248, %v1594, -inf
  %1603 = vmax.xlane.f32.xlu0 %v1602
  %v1604 = vpop.xlane.xlu0 %1603
  %v1605 = vsel %vm248, %v1595, -inf
  %1606 = vmax.xlane.f32.xlu0 %v1605
  %v1607 = vpop.xlane.xlu0 %1606
  %v1608 = vsub.f32 %v1592, %v1598
  %v1609 = vsub.f32 %v1593, %v1601
  %v1610 = vsub.f32 %v1594, %v1604
  %v1611 = vsub.f32 %v1595, %v1607
  %v1612 = vmul.f32 %v1608, 1.442695
  %v1613 = vpow.pop %v1612
  %v1614 = vmul.f32 %v1609, 1.442695
  %v1615 = vpow.pop %v1614
  %v1616 = vmul.f32 %v1610, 1.442695
  %v1617 = vpow.pop %v1616
  %v1618 = vmul.f32 %v1611, 1.442695
  %v1619 = vpow.pop %v1618
  %v1620 = vmul.f32 %v445, %v1613
  %v1621 = vmul.f32 %v446, %v1615
  %v1622 = vmul.f32 %v447, %v1617
  %v1623 = vmul.f32 %v448, %v1619
  %v1624 = vsel %vm248, %v1620, 0.0
  %1625 = vadd.xlane.f32.xlu0 %v1624
  %v1626 = vpop.xlane.xlu0 %1625
  %v1627 = vsel %vm248, %v1621, 0.0
  %1628 = vadd.xlane.f32.xlu0 %v1627
  %v1629 = vpop.xlane.xlu0 %1628
  %v1630 = vsel %vm248, %v1622, 0.0
  %1631 = vadd.xlane.f32.xlu0 %v1630
  %v1632 = vpop.xlane.xlu0 %1631
  %v1633 = vsel %vm248, %v1623, 0.0
  %1634 = vadd.xlane.f32.xlu0 %v1633
  %v1635 = vpop.xlane.xlu0 %1634
  %1636 = vrot.lane.b32.xlu0 %v1192, 64
  %v1637 = vpop.permute.xlu0 %1636
  %1638 = vrot.lane.b32.xlu0 %v1195, 64
  %v1639 = vpop.permute.xlu0 %1638
  %1640 = vrot.lane.b32.xlu0 %v1198, 64
  %v1641 = vpop.permute.xlu0 %1640
  %1642 = vrot.lane.b32.xlu0 %v1201, 64
  %v1643 = vpop.permute.xlu0 %1642
  %v1649 = vsel %vm248, %v1620, 0
  %v1652 = vsel %vm248, %v1621, 0
  %v1655 = vsel %vm248, %v1622, 0
  %v1658 = vsel %vm248, %v1623, 0
  %1660 = vmatpush.msra.mxu0 0.0
  %1661 = vmatpush.msra.mxu0 0.0
  %1662 = vmatpush.msra.mxu0 0.0
  %1663 = vmatpush.msra.mxu0 0.0
  %1664 = vmatpush.msra.mxu0 0.0
  %1665 = vmatpush.msra.mxu0 0.0
  %1666 = vmatpush.msra.mxu0 0.0
  %1667 = vmatpush.msra.mxu0 0.0
  %1668 = vmatpush.msra.mxu0 0.0
  %1669 = vmatpush.msra.mxu0 0.0
  %1670 = vmatpush.msra.mxu0 0.0
  %1671 = vmatpush.msra.mxu0 0.0
  %1672 = vmatpush.msra.mxu0 %v1643
  %1673 = vmatpush.msra.mxu0 %v1641
  %1674 = vmatpush.msra.mxu0 %v1639
  %1675 = vmatpush.msra.mxu0 %v1637
  %1676 = vmatmul.f32.gmra.mxu0 %v1649
  %v1677 = vpop.f32.mrf.mxu0
  %v1678 = vadd.f32 0.0, %v1677
  %1679 = vmatmul.f32.gmra.mxu0 %v1652
  %v1680 = vpop.f32.mrf.mxu0
  %v1681 = vadd.f32 0.0, %v1680
  %1682 = vmatmul.f32.gmra.mxu0 %v1655
  %v1683 = vpop.f32.mrf.mxu0
  %v1684 = vadd.f32 0.0, %v1683
  %1685 = vmatmul.f32.gmra.mxu0 %v1658
  %v1686 = vpop.f32.mrf.mxu0
  %v1687 = vadd.f32 0.0, %v1686
  %1688 = vdwg.mxu0
  %vm1689 = vcmp.gt.f32.partialorder %v1626, 0.0
  %vm1690 = vcmp.gt.f32.partialorder %v1629, 0.0
  %vm1691 = vcmp.gt.f32.partialorder %v1632, 0.0
  %vm1692 = vcmp.gt.f32.partialorder %v1635, 0.0
  %v1693 = vsel %vm1689, %v1626, 1.0
  %v1694 = vsel %vm1690, %v1629, 1.0
  %v1695 = vsel %vm1691, %v1632, 1.0
  %v1696 = vsel %vm1692, %v1635, 1.0
  %v1697 = vrcp.pop %v1693
  %v1698 = vrcp.pop %v1694
  %v1699 = vrcp.pop %v1695
  %v1700 = vrcp.pop %v1696
  %v1701 = vmul.f32 %v1678, %v1697
  %v1702 = vmul.f32 %v1681, %v1698
  %v1703 = vmul.f32 %v1684, %v1699
  %v1704 = vmul.f32 %v1687, %v1700
  %v1705 = vsel %vm1689, 1, 0
  %v1706 = vsel %vm1690, 1, 0
  %v1707 = vsel %vm1691, 1, 0
  %v1708 = vsel %vm1692, 1, 0
  %vm1709 = vcmp.eq.s32.totalorder %v1705, 1
  %vm1710 = vcmp.eq.s32.totalorder %v1706, 1
  %vm1711 = vcmp.eq.s32.totalorder %v1707, 1
  %vm1712 = vcmp.eq.s32.totalorder %v1708, 1
  %v1713 = vsel %vm1709, %v1701, 0.0
  %v1714 = vsel %vm1710, %v1702, 0.0
  %v1715 = vsel %vm1711, %v1703, 0.0
  %v1716 = vsel %vm1712, %v1704, 0.0
  %v1717 = vadd.f32 %v1153, %v1530
  %v1718 = vadd.f32 %v1154, %v1532
  %v1719 = vadd.f32 %v1155, %v1535
  %v1720 = vadd.f32 %v1156, %v1537
  %v1721 = vadd.f32 %v1717, %v1713
  %v1722 = vadd.f32 %v1718, %v1714
  %v1723 = vadd.f32 %v1719, %v1715
  %v1724 = vadd.f32 %v1720, %v1716
  %v1725 = vsel %vm248, %v1721, 0.0
  %1726 = vadd.xlane.f32.xlu0 %v1725
  %v1727 = vpop.xlane.xlu0 %1726
  %v1728 = vsel %vm248, %v1722, 0.0
  %1729 = vadd.xlane.f32.xlu0 %v1728
  %v1730 = vpop.xlane.xlu0 %1729
  %v1731 = vsel %vm248, %v1723, 0.0
  %1732 = vadd.xlane.f32.xlu0 %v1731
  %v1733 = vpop.xlane.xlu0 %1732
  %v1734 = vsel %vm248, %v1724, 0.0
  %1735 = vadd.xlane.f32.xlu0 %v1734
  %v1736 = vpop.xlane.xlu0 %1735
  %v1737 = vmul.f32 %v1727, %v1064
  %v1738 = vmul.f32 %v1730, %v1064
  %v1739 = vmul.f32 %v1733, %v1064
  %v1740 = vmul.f32 %v1736, %v1064
  %v1741 = vsub.f32 %v1721, %v1737
  %v1742 = vsub.f32 %v1722, %v1738
  %v1743 = vsub.f32 %v1723, %v1739
  %v1744 = vsub.f32 %v1724, %v1740
  %v1745 = vmul.f32 %v1741, %v1741
  %v1746 = vmul.f32 %v1742, %v1742
  %v1747 = vmul.f32 %v1743, %v1743
  %v1748 = vmul.f32 %v1744, %v1744
  %v1749 = vsel %vm248, %v1745, 0.0
  %1750 = vadd.xlane.f32.xlu0 %v1749
  %v1751 = vpop.xlane.xlu0 %1750
  %v1752 = vsel %vm248, %v1746, 0.0
  %1753 = vadd.xlane.f32.xlu0 %v1752
  %v1754 = vpop.xlane.xlu0 %1753
  %v1755 = vsel %vm248, %v1747, 0.0
  %1756 = vadd.xlane.f32.xlu0 %v1755
  %v1757 = vpop.xlane.xlu0 %1756
  %v1758 = vsel %vm248, %v1748, 0.0
  %1759 = vadd.xlane.f32.xlu0 %v1758
  %v1760 = vpop.xlane.xlu0 %1759
  %v1761 = vmul.f32 %v1751, %v1064
  %v1762 = vmul.f32 %v1754, %v1064
  %v1763 = vmul.f32 %v1757, %v1064
  %v1764 = vmul.f32 %v1760, %v1064
  %v1765 = vadd.f32 %v1761, 1e-05
  %v1766 = vadd.f32 %v1762, 1e-05
  %v1767 = vadd.f32 %v1763, 1e-05
  %v1768 = vadd.f32 %v1764, 1e-05
  %v1769 = vrsqrt.pop %v1765
  %v1770 = vmul.f32 %v1769, %v1765
  %v1771 = vmul.f32 %v1770, %v1769
  %v1772 = vmul.f32 0.5, %v1771
  %v1773 = vsub.f32 1.5, %v1772
  %v1774 = vmul.f32 %v1769, %v1773
  %vm1775 = vweird.f32 %v1765
  %vm1776 = vweird.f32 %v1769
  %vm1777 = vmor %vm1775, %vm1776
  %v1778 = vsel %vm1777, %v1769, %v1774
  %v1779 = vrsqrt.pop %v1766
  %v1780 = vmul.f32 %v1779, %v1766
  %v1781 = vmul.f32 %v1780, %v1779
  %v1782 = vmul.f32 0.5, %v1781
  %v1783 = vsub.f32 1.5, %v1782
  %v1784 = vmul.f32 %v1779, %v1783
  %vm1785 = vweird.f32 %v1766
  %vm1786 = vweird.f32 %v1779
  %vm1787 = vmor %vm1785, %vm1786
  %v1788 = vsel %vm1787, %v1779, %v1784
  %v1789 = vrsqrt.pop %v1767
  %v1790 = vmul.f32 %v1789, %v1767
  %v1791 = vmul.f32 %v1790, %v1789
  %v1792 = vmul.f32 0.5, %v1791
  %v1793 = vsub.f32 1.5, %v1792
  %v1794 = vmul.f32 %v1789, %v1793
  %vm1795 = vweird.f32 %v1767
  %vm1796 = vweird.f32 %v1789
  %vm1797 = vmor %vm1795, %vm1796
  %v1798 = vsel %vm1797, %v1789, %v1794
  %v1799 = vrsqrt.pop %v1768
  %v1800 = vmul.f32 %v1799, %v1768
  %v1801 = vmul.f32 %v1800, %v1799
  %v1802 = vmul.f32 0.5, %v1801
  %v1803 = vsub.f32 1.5, %v1802
  %v1804 = vmul.f32 %v1799, %v1803
  %vm1805 = vweird.f32 %v1768
  %vm1806 = vweird.f32 %v1799
  %vm1807 = vmor %vm1805, %vm1806
  %v1808 = vsel %vm1807, %v1799, %v1804
  %v1809 = vmul.f32 %v1741, %v1778
  %v1810 = vmul.f32 %v1742, %v1788
  %v1811 = vmul.f32 %v1743, %v1798
  %v1812 = vmul.f32 %v1744, %v1808
  %s1813 = scalar_lea.vmem %s49, 1
  %v1814 = vld [vmem:[%s1813] sm:$0x1]
  %v1816 = vperm.slane %v1814, 0
  %v1818 = vmul.f32 %v1809, %v1816
  %v1819 = vmul.f32 %v1810, %v1816
  %v1820 = vmul.f32 %v1811, %v1816
  %v1821 = vmul.f32 %v1812, %v1816
  %s1822 = scalar_lea.vmem %s51, 1
  %v1823 = vld [vmem:[%s1822] sm:$0x1]
  %v1825 = vperm.slane %v1823, 0
  %v1827 = vadd.f32 %v1818, %v1825
  %v1828 = vadd.f32 %v1819, %v1825
  %v1829 = vadd.f32 %v1820, %v1825
  %v1830 = vadd.f32 %v1821, %v1825
  %v1831 = vld [vmem:[%s53] sm:$0xff]
  %v1832 = vld [vmem:[%s53 + $0x8] sm:$0xff]
  %v1833 = vld [vmem:[%s53 + $0x10] sm:$0xff]
  %v1834 = vld [vmem:[%s53 + $0x18] sm:$0xff]
  %v1835 = vld [vmem:[%s55] sm:$0x1]
  %v1837 = vperm.slane %v1835, 0
  %v1840 = vsel %vm248, %v1827, 0
  %v1843 = vsel %vm248, %v1828, 0
  %v1846 = vsel %vm248, %v1829, 0
  %v1849 = vsel %vm248, %v1830, 0
  %1851 = vmatpush.msra.mxu0 0.0
  %1852 = vmatpush.msra.mxu0 0.0
  %1853 = vmatpush.msra.mxu0 0.0
  %1854 = vmatpush.msra.mxu0 0.0
  %1855 = vmatpush.msra.mxu0 0.0
  %1856 = vmatpush.msra.mxu0 0.0
  %1857 = vmatpush.msra.mxu0 0.0
  %1858 = vmatpush.msra.mxu0 0.0
  %1859 = vmatpush.msra.mxu0 0.0
  %1860 = vmatpush.msra.mxu0 0.0
  %1861 = vmatpush.msra.mxu0 0.0
  %1862 = vmatpush.msra.mxu0 0.0
  %1863 = vmatpush.msra.mxu0 %v1834
  %1864 = vmatpush.msra.mxu0 %v1833
  %1865 = vmatpush.msra.mxu0 %v1832
  %1866 = vmatpush.msra.mxu0 %v1831
  %1867 = vmatmul.f32.gmra.mxu0 %v1840
  %v1868 = vpop.f32.mrf.mxu0
  %v1869 = vadd.f32 %v1837, %v1868
  %1870 = vmatmul.f32.gmra.mxu0 %v1843
  %v1871 = vpop.f32.mrf.mxu0
  %v1872 = vadd.f32 %v1837, %v1871
  %1873 = vmatmul.f32.gmra.mxu0 %v1846
  %v1874 = vpop.f32.mrf.mxu0
  %v1875 = vadd.f32 %v1837, %v1874
  %1876 = vmatmul.f32.gmra.mxu0 %v1849
  %v1877 = vpop.f32.mrf.mxu0
  %v1878 = vadd.f32 %v1837, %v1877
  %1879 = vdwg.mxu0
  %vm1880 = vcmp.ge.f32.partialorder %v1869, 0.0
  %vm1881 = vcmp.ge.f32.partialorder %v1872, 0.0
  %vm1882 = vcmp.ge.f32.partialorder %v1875, 0.0
  %vm1883 = vcmp.ge.f32.partialorder %v1878, 0.0
  %v1884 = vmul.f32 %v1869, 0.01
  %v1885 = vmul.f32 %v1872, 0.01
  %v1886 = vmul.f32 %v1875, 0.01
  %v1887 = vmul.f32 %v1878, 0.01
  %v1888 = vsel %vm1880, %v1869, %v1884
  %v1889 = vsel %vm1881, %v1872, %v1885
  %v1890 = vsel %vm1882, %v1875, %v1886
  %v1891 = vsel %vm1883, %v1878, %v1887
  %v1892 = vld [vmem:[%s13] sm:$0x1]
  %v1893 = vperm.slane %v1892, 0
  %vm1894 = vcmp.eq.s32.totalorder %v430, %v1893
  %v1895 = vsel %vm1894, 1.0, 0.0
  %v1896 = vpack.c.bf16 %v1895, %v1895
  %v1897 = vpack.c.bf16 %v1889, %v1888
  %v1898 = vpack.c.bf16 %v1891, %v1890
  %v1900 = vsel %vm248, %v1896, 0
  %1902 = vmatpush.bf16.msra.mxu0 0
  %1903 = vmatpush.bf16.msra.mxu0 0
  %1904 = vmatpush.bf16.msra.mxu0 0
  %1905 = vmatpush.bf16.msra.mxu0 0
  %1906 = vmatpush.bf16.msra.mxu0 0
  %1907 = vmatpush.bf16.msra.mxu0 0
  %1908 = vmatpush.bf16.msra.mxu0 %v1898
  %1909 = vmatpush.bf16.msra.mxu0 %v1897
  %1910 = vmatmul.bf16.gmra.mxu0 %v1900
  %v1911 = vpop.f32.mrf.mxu0
  %v1912 = vadd.f32 0.0, %v1911
  %v1913 = vpop.f32.mrf.mxu0
  %1914 = vdwg.mxu0
  %v1915 = vld [vmem:[%s17] sm:$0xf]
  %1916 = vset.pattern.permute.xlu0 0
  %1917 = vperm.xlu0 %1916, %v1915
  %v1918 = vpop.permute.xlu0 %1917
  %vm1919 = vcmp.eq.s32.totalorder %v1918, %v128
  %v1920 = vsel %vm1919, 1.0, 0.0
  %v1922 = vsel %vm202, %v1920, 0
  %v1925 = vsel %vm215, %v1912, 0
  %1927 = vmatpush.msra.mxu0 0.0
  %1928 = vmatpush.msra.mxu0 0.0
  %1929 = vmatpush.msra.mxu0 0.0
  %1930 = vmatpush.msra.mxu0 0.0
  %1931 = vmatpush.msra.mxu0 0.0
  %1932 = vmatpush.msra.mxu0 0.0
  %1933 = vmatpush.msra.mxu0 0.0
  %1934 = vmatpush.msra.mxu0 0.0
  %1935 = vmatpush.msra.mxu0 0.0
  %1936 = vmatpush.msra.mxu0 0.0
  %1937 = vmatpush.msra.mxu0 0.0
  %1938 = vmatpush.msra.mxu0 0.0
  %1939 = vmatpush.msra.mxu0 0.0
  %1940 = vmatpush.msra.mxu0 0.0
  %1941 = vmatpush.msra.mxu0 0.0
  %1942 = vmatpush.msra.mxu0 %v1925
  %1943 = vmatmul.f32.gmra.mxu0 %v1922
  %v1944 = vpop.f32.mrf.mxu0
  %v1945 = vadd.f32 0.0, %v1944
  %1946 = vdwg.mxu0
  %v1947 = vadd.s32 %v1915, 2
  %1948 = vset.pattern.permute.xlu0 0
  %1949 = vperm.xlu0 %1948, %v1947
  %v1950 = vpop.permute.xlu0 %1949
  %vm1951 = vcmp.eq.s32.totalorder %v1950, %v128
  %v1952 = vsel %vm1951, 1.0, 0.0
  %v1954 = vsel %vm202, %v1952, 0
  %1956 = vmatpush.msra.mxu0 0.0
  %1957 = vmatpush.msra.mxu0 0.0
  %1958 = vmatpush.msra.mxu0 0.0
  %1959 = vmatpush.msra.mxu0 0.0
  %1960 = vmatpush.msra.mxu0 0.0
  %1961 = vmatpush.msra.mxu0 0.0
  %1962 = vmatpush.msra.mxu0 0.0
  %1963 = vmatpush.msra.mxu0 0.0
  %1964 = vmatpush.msra.mxu0 0.0
  %1965 = vmatpush.msra.mxu0 0.0
  %1966 = vmatpush.msra.mxu0 0.0
  %1967 = vmatpush.msra.mxu0 0.0
  %1968 = vmatpush.msra.mxu0 0.0
  %1969 = vmatpush.msra.mxu0 0.0
  %1970 = vmatpush.msra.mxu0 0.0
  %1971 = vmatpush.msra.mxu0 %v1925
  %1972 = vmatmul.f32.gmra.mxu0 %v1954
  %v1973 = vpop.f32.mrf.mxu0
  %v1974 = vadd.f32 0.0, %v1973
  %1975 = vdwg.mxu0
  %v1976 = vld [vmem:[%s15] sm:$0xf]
  %1977 = vset.pattern.permute.xlu0 0
  %1978 = vperm.xlu0 %1977, %v1976
  %v1979 = vpop.permute.xlu0 %1978
  %vm1980 = vcmp.eq.s32.totalorder %v1979, %v128
  %v1981 = vsel %vm1980, 1.0, 0.0
  %v1982 = vld [vmem:[%s23] sm:$0x3f]
  %vm1983 = vcmask 48128
  %v1985 = vsel %vm1983, %v1981, 0
  %vm1987 = vcmask 1045504
  %v1989 = vsel %vm1987, %v1982, 0
  %1991 = vmatpush.msra.mxu0 0.0
  %1992 = vmatpush.msra.mxu0 0.0
  %1993 = vmatpush.msra.mxu0 0.0
  %1994 = vmatpush.msra.mxu0 0.0
  %1995 = vmatpush.msra.mxu0 0.0
  %1996 = vmatpush.msra.mxu0 0.0
  %1997 = vmatpush.msra.mxu0 0.0
  %1998 = vmatpush.msra.mxu0 0.0
  %1999 = vmatpush.msra.mxu0 0.0
  %2000 = vmatpush.msra.mxu0 0.0
  %2001 = vmatpush.msra.mxu0 0.0
  %2002 = vmatpush.msra.mxu0 0.0
  %2003 = vmatpush.msra.mxu0 0.0
  %2004 = vmatpush.msra.mxu0 0.0
  %2005 = vmatpush.msra.mxu0 0.0
  %2006 = vmatpush.msra.mxu0 %v1989
  %2007 = vmatmul.f32.gmra.mxu0 %v1985
  %v2008 = vpop.f32.mrf.mxu0
  %v2009 = vadd.f32 0.0, %v2008
  %2010 = vdwg.mxu0
  %v2011 = vld [vmem:[%s57] sm:$0xff]
  %v2012 = vld [vmem:[%s57 + $0x8] sm:$0xff]
  %v2013 = vld [vmem:[%s57 + $0x10] sm:$0xff]
  %v2014 = vld [vmem:[%s57 + $0x18] sm:$0xff]
  %v2016 = vsel %vm248, %v1945, 0
  %2018 = vmatpush.msra.mxu0 0.0
  %2019 = vmatpush.msra.mxu0 0.0
  %2020 = vmatpush.msra.mxu0 0.0
  %2021 = vmatpush.msra.mxu0 0.0
  %2022 = vmatpush.msra.mxu0 0.0
  %2023 = vmatpush.msra.mxu0 0.0
  %2024 = vmatpush.msra.mxu0 0.0
  %2025 = vmatpush.msra.mxu0 0.0
  %2026 = vmatpush.msra.mxu0 0.0
  %2027 = vmatpush.msra.mxu0 0.0
  %2028 = vmatpush.msra.mxu0 0.0
  %2029 = vmatpush.msra.mxu0 0.0
  %2030 = vmatpush.msra.mxu0 %v2014
  %2031 = vmatpush.msra.mxu0 %v2013
  %2032 = vmatpush.msra.mxu0 %v2012
  %2033 = vmatpush.msra.mxu0 %v2011
  %2034 = vmatmul.f32.gmra.mxu0 %v2016
  %v2035 = vpop.f32.mrf.mxu0
  %v2036 = vadd.f32 0.0, %v2035
  %2037 = vdwg.mxu0
  %v2039 = vsel %vm248, %v1974, 0
  %2041 = vmatpush.msra.mxu0 0.0
  %2042 = vmatpush.msra.mxu0 0.0
  %2043 = vmatpush.msra.mxu0 0.0
  %2044 = vmatpush.msra.mxu0 0.0
  %2045 = vmatpush.msra.mxu0 0.0
  %2046 = vmatpush.msra.mxu0 0.0
  %2047 = vmatpush.msra.mxu0 0.0
  %2048 = vmatpush.msra.mxu0 0.0
  %2049 = vmatpush.msra.mxu0 0.0
  %2050 = vmatpush.msra.mxu0 0.0
  %2051 = vmatpush.msra.mxu0 0.0
  %2052 = vmatpush.msra.mxu0 0.0
  %2053 = vmatpush.msra.mxu0 %v2014
  %2054 = vmatpush.msra.mxu0 %v2013
  %2055 = vmatpush.msra.mxu0 %v2012
  %2056 = vmatpush.msra.mxu0 %v2011
  %2057 = vmatmul.f32.gmra.mxu0 %v2039
  %v2058 = vpop.f32.mrf.mxu0
  %v2059 = vadd.f32 0.0, %v2058
  %2060 = vdwg.mxu0
  %v2061 = vadd.f32 %v2036, %v2009
  %2063 = vrot.lane.b32.xlu0 %v2059, 96
  %v2064 = vpop.permute.xlu0 %2063
  %v2066 = vsub.f32 %v2061, %v2064
  %v2067 = vadd.f32 %v2059, %v2009
  %2069 = vrot.lane.b32.xlu0 %v2036, 96
  %v2070 = vpop.permute.xlu0 %2069
  %v2072 = vsub.f32 %v2067, %v2070
  %v2073 = vmul.f32 %v2066, %v2066
  %vm2074 = vcmask 257024
  %v2075 = vsel %vm2074, %v2073, 0.0
  %2076 = vadd.xlane.f32.xlu0 %v2075
  %v2077 = vpop.xlane.xlu0 %2076
  %v2078 = vrsqrt.pop %v2077
  %v2079 = vmul.f32 %v2078, %v2077
  %v2080 = vmul.f32 %v2079, %v2078
  %v2081 = vmul.f32 0.5, %v2080
  %v2082 = vsub.f32 1.5, %v2081
  %v2083 = vmul.f32 %v2078, %v2082
  %v2084 = vmul.f32 %v2077, %v2083
  %vm2085 = vcmp.eq.f32.partialorder %v2077, inf
  %v2086 = vsel %vm2085, %v2077, %v2084
  %vm2087 = vcmp.eq.f32.partialorder %v2077, 0.0
  %v2088 = vand.u32 %v2077, 2147483648
  %v2089 = vsel %vm2087, %v2088, %v2086
  %v2090 = vmul.f32 %v2072, %v2072
  %v2091 = vsel %vm2074, %v2090, 0.0
  %2092 = vadd.xlane.f32.xlu0 %v2091
  %v2093 = vpop.xlane.xlu0 %2092
  %v2094 = vrsqrt.pop %v2093
  %v2095 = vmul.f32 %v2094, %v2093
  %v2096 = vmul.f32 %v2095, %v2094
  %v2097 = vmul.f32 0.5, %v2096
  %v2098 = vsub.f32 1.5, %v2097
  %v2099 = vmul.f32 %v2094, %v2098
  %v2100 = vmul.f32 %v2093, %v2099
  %vm2101 = vcmp.eq.f32.partialorder %v2093, inf
  %v2102 = vsel %vm2101, %v2093, %v2100
  %vm2103 = vcmp.eq.f32.partialorder %v2093, 0.0
  %v2104 = vand.u32 %v2093, 2147483648
  %v2105 = vsel %vm2103, %v2104, %v2102
  %v2106 = vadd.f32 %v2089, %v2105
  %vm2107 = vcmask 3072
  %2108 = vst.msk [vmem:[%s59] sm:$0xf] %vm2107, %v2106
  // Predicated region
  $region118: #{ddi_forward.1} parent=0 // pred_check
    _
  $region119: #{ddi_forward.1} parent=0 // pred_check_branch
    %2110 = sbr.rel (0) target = $region121
  $region120: #{ddi_forward.1} parent=0 // pred_region
    _
  $region121: #{ddi_forward.1} parent=0 // pred_fallthru
    _
  // Predicated region
  $region122: #{ddi_forward.1} parent=0 // pred_check
    _
  $region123: #{ddi_forward.1} parent=0 // pred_check_branch
    %2112 = sbr.rel (0) target = $region125
  $region124: #{ddi_forward.1} parent=0 // pred_region
    _
  $region125: #{ddi_forward.1} parent=0 // pred_fallthru
    _

</llo_original>
